<compile_context>
chip_gen: v7x
topology: tpu7x:2x2x1
jax: 0.10.0
libtpu: 0.0.40
codegen_flags: <defaults>
</compile_context>

<pallas_src>
import functools

import jax
import jax.numpy as jnp
import numpy as np
from jax.experimental import pallas as pl
from jax.experimental.pallas import tpu as pltpu


def _round_up(x, m):
    return ((x + m - 1) // m) * m


def _pick_chunk(total, requested, default_target, align):
    """Largest chunk <= target that divides `total` and is `align`-aligned
    (or equals `total`, which always satisfies the Mosaic (8,128) rule)."""
    target = default_target if requested is None else int(requested)
    target = max(1, min(target, total, 128))   # 128 caps the static unroll
    for cand in range(target, 0, -1):
        if total % cand == 0 and (cand % align == 0 or cand == total):
            return cand
    return total


def _lstm_fused_kernel(x_ref, wih_ref, whh_ref, b_ref, wout_ref, bout_ref,
                       out_ref, h_ref, c_ref, gx_ref, *, hidden_pad):
    """One grid step == one (batch block, time chunk).  h/c persist in VMEM."""
    Hp = hidden_pad
    bb, tc, in_dim = x_ref.shape
    c_idx = pl.program_id(1)
    mm_dtype = whh_ref.dtype                 # MXU operand dtype (bf16 or f32)

    # Reset recurrent state at the start of each batch block's time sweep.
    @pl.when(c_idx == 0)
    def _():
        h_ref[...] = jnp.zeros_like(h_ref)
        c_ref[...] = jnp.zeros_like(c_ref)

    # ---- Phase 1: hoisted input projection — ONE big MXU matmul per chunk.
    # In-kernel cast (no wrapper HBM pass over x), transposed once to
    # time-major so each step's gate tile is a contiguous (bb, 4Hp) slab.
    xt = jnp.transpose(x_ref[...].astype(mm_dtype), (1, 0, 2))      # (tc,bb,I)
    gx = jnp.dot(xt.reshape(tc * bb, in_dim), wih_ref[...],
                 preferred_element_type=jnp.float32)
    gx_ref[...] = (gx + b_ref[...]).reshape(tc, bb, 4 * Hp)         # f32

    # ---- Phase 2: serial recurrence — ONE (bb,Hp)x(Hp,4Hp) matmul per step.
    # TODO(synk): hold W_hh in the MXU across steps via pltpu.matmul_push_rhs /
    #   matmul_acc_lhs / matmul_pop when the (Hp,4Hp) tile fits the staging
    #   registers; for now rely on Mosaic hoisting the identical weight push
    #   out of the bounded unrolled loop.
    h = h_ref[...]                           # state math stays float32
    c = c_ref[...]
    for t in range(tc):                      # bounded static unroll (tc<=128)
        gates = gx_ref[t] + jnp.dot(h.astype(mm_dtype), whh_ref[...],
                                    preferred_element_type=jnp.float32)
        # Lane-aligned gate slices (Hp is a multiple of 128).
        # NOTE(v5e): EUP is f32-only / single-issue; if profiling shows the
        # EUP slot saturated at large bb*Hp, swap sigmoid/tanh for a VPU
        # polynomial approximation.
        i_g = jax.nn.sigmoid(gates[:, 0 * Hp:1 * Hp])
        f_g = jax.nn.sigmoid(gates[:, 1 * Hp:2 * Hp])
        g_g = jnp.tanh(gates[:, 2 * Hp:3 * Hp])
        o_g = jax.nn.sigmoid(gates[:, 3 * Hp:4 * Hp])
        c = f_g * c + i_g * g_g
        h = o_g * jnp.tanh(c)
    h_ref[...] = h
    c_ref[...] = c

    # ---- Output layer on output[:, -1, :] == final hidden state.
    @pl.when(c_idx == pl.num_programs(1) - 1)
    def _():
        y = jnp.dot(h.astype(mm_dtype), wout_ref[...],
                    preferred_element_type=jnp.float32) + bout_ref[...]
        out_ref[...] = y.astype(out_ref.dtype)


def _prepare_kernel_params(params, hidden_dim, compute_dtype):
    """PyTorch-layout params -> transposed, lane-padded kernel layout.

    Each gate block of the 4H axis is padded H -> Hp (multiple of 128) and the
    Linear output is padded O -> Op (>=128), with zeros.  Zero padding is
    inert: padded gate pre-activations are 0 -> padded h/c lanes stay exactly
    0 (state is zero-initialized), and padded W_out rows/cols contribute 0.
    """
    H = hidden_dim
    Hp = _round_up(H, 128)
    O = params["w_out"].shape[0]
    Op = _round_up(O, 128)

    def pad_gate_cols(w):                      # (rows, 4H) -> (rows, 4Hp)
        rows = w.shape[0]
        w = w.reshape(rows, 4, H)
        w = jnp.pad(w, ((0, 0), (0, 0), (0, Hp - H)))
        return w.reshape(rows, 4 * Hp)

    w_ih = pad_gate_cols(params["w_ih"].T)                            # (I, 4Hp)
    w_hh = pad_gate_cols(params["w_hh"].T)                            # (H, 4Hp)
    w_hh = jnp.pad(w_hh, ((0, Hp - H), (0, 0)))                       # (Hp, 4Hp)
    bias = pad_gate_cols((params["b_ih"] + params["b_hh"])[None, :])  # (1, 4Hp)
    w_out = jnp.pad(params["w_out"].T, ((0, Hp - H), (0, Op - O)))    # (Hp, Op)
    b_out = jnp.pad(params["b_out"][None, :], ((0, 0), (0, Op - O)))  # (1, Op)

    kp = {
        "w_ih": w_ih.astype(compute_dtype),
        "w_hh": w_hh.astype(compute_dtype),
        "bias": bias.astype(jnp.float32),      # bias added post-MXU in f32
        "w_out": w_out.astype(compute_dtype),
        "b_out": b_out.astype(jnp.float32),
    }
    return kp, Hp, Op


def predictor_forward(x_btI, params, *, time_chunk=None, batch_block=None,
                      compute_dtype=jnp.bfloat16):
    """Forward pass of `Predictor` (hidden0=None, i.e. zero-initialized state).

    x_btI:  (B, T, I) batch_first input, like the PyTorch module.
    params: PyTorch-layout dict (see init_params).
    compute_dtype: MXU operand dtype.  Default bfloat16 (v5e/v6e/v7x native);
      gate math and the h/c state always stay float32.  Use jnp.float32 for a
      bit-tight match to the f32 reference.
    batch_block: on v7x (2 TCs) set to ~B/2 rounded to a multiple of 8 when B
      is large; on v5e/v6e leave None (one big block fills the MXU better).
    """
    B, T, in_dim = x_btI.shape
    H = params["w_hh"].shape[1]
    O = params["w_out"].shape[0]

    kp, Hp, Op = _prepare_kernel_params(params, H, compute_dtype)

    # Sublane-pad the batch: dense (8,128) vregs for the per-step VPU/EUP ops
    # and an unmasked output store; padded rows are discarded at the end.
    Bp = _round_up(B, 8)
    if Bp != B:
        x_btI = jnp.pad(x_btI, ((0, Bp - B), (0, 0), (0, 0)))

    tc = _pick_chunk(T, time_chunk, default_target=min(T, 32), align=8)
    bb = _pick_chunk(Bp, batch_block, default_target=Bp, align=8)
    grid = (Bp // bb, T // tc)

    # Explicit VMEM budget from the actual buffers (weights are single-
    # buffered; x and out are double-buffered by the pipeline), with margin,
    # floored at the default scoped limit and capped at v7x's 64 MiB.
    w_isz = jnp.dtype(compute_dtype).itemsize
    x_isz = jnp.dtype(x_btI.dtype).itemsize
    vmem_bytes = (
        (in_dim * 4 * Hp + Hp * 4 * Hp + Hp * Op) * w_isz   # weights (x1)
        + (4 * Hp + Op) * 4                                 # biases
        + 2 * bb * tc * in_dim * x_isz                      # x chunk (x2)
        + 2 * bb * Op * 4                                   # out (x2)
        + tc * bb * 4 * Hp * 4                              # gx scratch
        + 2 * bb * Hp * 4)                                  # h, c scratch
    vmem_bytes = int(min(max(2 * vmem_bytes + (8 << 20), 32 << 20), 64 << 20))

    kernel = functools.partial(_lstm_fused_kernel, hidden_pad=Hp)
    const_map = lambda b, c: (0, 0)   # weights/biases: DMA'd once, 1 buffer

    out_padded = pl.pallas_call(
        kernel,
        out_shape=jax.ShapeDtypeStruct((Bp, Op), jnp.float32),
        grid_spec=pltpu.PrefetchScalarGridSpec(
            num_scalar_prefetch=0,
            grid=grid,
            in_specs=[
                pl.BlockSpec((bb, tc, in_dim), lambda b, c: (b, c, 0)),   # x
                pl.BlockSpec((in_dim, 4 * Hp), const_map,
                             pipeline_mode=pl.Buffered(1)),               # W_ih^T
                pl.BlockSpec((Hp, 4 * Hp), const_map,
                             pipeline_mode=pl.Buffered(1)),               # W_hh^T
                pl.BlockSpec((1, 4 * Hp), const_map,
                             pipeline_mode=pl.Buffered(1)),               # bias
                pl.BlockSpec((Hp, Op), const_map,
                             pipeline_mode=pl.Buffered(1)),               # W_out^T
                pl.BlockSpec((1, Op), const_map,
                             pipeline_mode=pl.Buffered(1)),               # b_out
            ],
            out_specs=pl.BlockSpec((bb, Op), lambda b, c: (b, 0)),
            scratch_shapes=[
                pltpu.VMEM((bb, Hp), jnp.float32),          # h state
                pltpu.VMEM((bb, Hp), jnp.float32),          # c state
                pltpu.VMEM((tc, bb, 4 * Hp), jnp.float32),  # time-major gx
            ],
        ),
        compiler_params=pltpu.CompilerParams(
            # batch blocks are independent (megacore parallel on v7x);
            # the time recurrence is inherently serial.
            dimension_semantics=("parallel", "arbitrary"),
            vmem_limit_bytes=vmem_bytes,
        ),
    )(x_btI, kp["w_ih"], kp["w_hh"], kp["bias"], kp["w_out"], kp["b_out"])

    return out_padded[:B, :O]


def init_params(key, input_dim, hidden_dim, output_dim):
    """Deterministic init with PyTorch shapes/layout, U(-1/sqrt(H), 1/sqrt(H))."""
    ks = jax.random.split(key, 6)
    bound = 1.0 / np.sqrt(hidden_dim)
    u = lambda k, shape: jax.random.uniform(k, shape, jnp.float32, -bound, bound)
    return {
        "w_ih": u(ks[0], (4 * hidden_dim, input_dim)),    # weight_ih_l0
        "w_hh": u(ks[1], (4 * hidden_dim, hidden_dim)),   # weight_hh_l0
        "b_ih": u(ks[2], (4 * hidden_dim,)),
        "b_hh": u(ks[3], (4 * hidden_dim,)),
        "w_out": u(ks[4], (output_dim, hidden_dim)),      # Linear.weight
        "b_out": u(ks[5], (output_dim,)),                 # Linear.bias
    }


def predictor_reference(x_btI, params):
    """Pure-JAX reference with PyTorch semantics, for the correctness check."""
    B = x_btI.shape[0]
    H = params["w_hh"].shape[1]
    w_ih = params["w_ih"].T      # (I, 4H)
    w_hh = params["w_hh"].T      # (H, 4H)
    bias = params["b_ih"] + params["b_hh"]
    w_out = params["w_out"].T    # (H, O)
    b_out = params["b_out"]

    h = jnp.zeros((B, H), jnp.float32)
    c = jnp.zeros((B, H), jnp.float32)

    def step(carry, x_t):
        h, c = carry
        g = x_t @ w_ih + h @ w_hh + bias
        i = jax.nn.sigmoid(g[:, 0 * H:1 * H])
        f = jax.nn.sigmoid(g[:, 1 * H:2 * H])
        gg = jnp.tanh(g[:, 2 * H:3 * H])
        o = jax.nn.sigmoid(g[:, 3 * H:4 * H])
        c = f * c + i * gg
        h = o * jnp.tanh(c)
        return (h, c), None

    (h, c), _ = jax.lax.scan(step, (h, c), jnp.transpose(x_btI, (1, 0, 2)))
    return h @ w_out + b_out


if __name__ == "__main__":
    B, T, I, H, O = 2, 8, 16, 32, 4

    key = jax.random.PRNGKey(0)
    k_x, k_p = jax.random.split(key)
    x = jax.random.normal(k_x, (B, T, I), jnp.float32)    # batch_first input
    params = init_params(k_p, I, H, O)

    ref = predictor_reference(x, params)

    # Exact path (f32 MXU operands): tight tolerance.
    out_f32 = predictor_forward(x, params, compute_dtype=jnp.float32)
    out_f32 = jax.block_until_ready(out_f32)
    np.testing.assert_allclose(np.asarray(out_f32), np.asarray(ref),
                               rtol=1e-5, atol=1e-5)

    # Default production path (bf16 MXU operands, f32 gate/state math):
    # expected small precision loss -> loose tolerance.
    out_bf16 = predictor_forward(x, params)
    out_bf16 = jax.block_until_ready(out_bf16)
    np.testing.assert_allclose(np.asarray(out_bf16), np.asarray(ref),
                               rtol=5e-2, atol=5e-2)

    print("KERNEL_OK")
</pallas_src>

<mosaic_0001>
module attributes {stable_mosaic.version = 11 : i64} {
  func.func @_lstm_fused_kernel(%arg0: i32, %arg1: i32, %arg2: memref<8x8x16xf32, #tpu.memory_space<vmem>>, %arg3: memref<16x512xf32, #tpu.memory_space<vmem>>, %arg4: memref<128x512xf32, #tpu.memory_space<vmem>>, %arg5: memref<1x512xf32, #tpu.memory_space<vmem>>, %arg6: memref<128x128xf32, #tpu.memory_space<vmem>>, %arg7: memref<1x128xf32, #tpu.memory_space<vmem>>, %arg8: memref<8x128xf32, #tpu.memory_space<vmem>>, %arg9: memref<8x128xf32, #tpu.memory_space<vmem>>, %arg10: memref<8x128xf32, #tpu.memory_space<vmem>>, %arg11: memref<8x8x512xf32, #tpu.memory_space<vmem>>) attributes {dimension_semantics = [#tpu.dimension_semantics<parallel>, #tpu.dimension_semantics<arbitrary>], iteration_bounds = array<i64: 1, 1>, scalar_prefetch = 0 : i64, scratch_operands = 3 : i64, tpu.core_type = #tpu.core_type<tc>, window_params = [{transform_indices = @transform_0, window_bounds = array<i64: 8, 8, 16>}, {pipeline_mode = #tpu.pipeline_mode<synchronous>, transform_indices = @transform_1, window_bounds = array<i64: 16, 512>}, {pipeline_mode = #tpu.pipeline_mode<synchronous>, transform_indices = @transform_2, window_bounds = array<i64: 128, 512>}, {pipeline_mode = #tpu.pipeline_mode<synchronous>, transform_indices = @transform_3, window_bounds = array<i64: 1, 512>}, {pipeline_mode = #tpu.pipeline_mode<synchronous>, transform_indices = @transform_4, window_bounds = array<i64: 128, 128>}, {pipeline_mode = #tpu.pipeline_mode<synchronous>, transform_indices = @transform_5, window_bounds = array<i64: 1, 128>}, {transform_indices = @transform_6, window_bounds = array<i64: 8, 128>}]} {
    %c0_i32 = arith.constant 0 : i32
    %0 = arith.cmpi eq, %arg1, %c0_i32 : i32
    %1 = arith.extui %0 : i1 to i32
    %c0_i32_0 = arith.constant 0 : i32
    %2 = arith.cmpi ne, %1, %c0_i32_0 : i32
    scf.if %2 {
      %cst_85 = arith.constant 0.000000e+00 : f32
      %260 = vector.broadcast %cst_85 : f32 to vector<8x128xf32>
      %c0_86 = arith.constant 0 : index
      %c0_87 = arith.constant 0 : index
      %261 = vector.load %arg9[%c0_86, %c0_87] : memref<8x128xf32, #tpu.memory_space<vmem>>, vector<8x128xf32>
      tpu.vector_store %arg9[%c0_86, %c0_87], %260 {strides = array<i32>} : memref<8x128xf32, #tpu.memory_space<vmem>>, vector<8x128xf32>,
      %cst_88 = arith.constant 0.000000e+00 : f32
      %262 = vector.broadcast %cst_88 : f32 to vector<8x128xf32>
      %c0_89 = arith.constant 0 : index
      %c0_90 = arith.constant 0 : index
      %263 = vector.load %arg10[%c0_89, %c0_90] : memref<8x128xf32, #tpu.memory_space<vmem>>, vector<8x128xf32>
      tpu.vector_store %arg10[%c0_89, %c0_90], %262 {strides = array<i32>} : memref<8x128xf32, #tpu.memory_space<vmem>>, vector<8x128xf32>,
    } else {
    }
    %c0 = arith.constant 0 : index
    %c0_1 = arith.constant 0 : index
    %c0_2 = arith.constant 0 : index
    %3 = vector.load %arg2[%c0, %c0_1, %c0_2] : memref<8x8x16xf32, #tpu.memory_space<vmem>>, vector<8x8x16xf32>
    %4 = tpu.transpose %3, [1, 0, 2] : vector<8x8x16xf32> -> vector<8x8x16xf32>
    %5 = vector.shape_cast %4 : vector<8x8x16xf32> to vector<64x16xf32>
    %c0_3 = arith.constant 0 : index
    %c0_4 = arith.constant 0 : index
    %6 = vector.load %arg3[%c0_3, %c0_4] : memref<16x512xf32, #tpu.memory_space<vmem>>, vector<16x512xf32>
    %cst = arith.constant dense<0.000000e+00> : vector<64x512xf32>
    %7 = tpu.matmul %5, %6, %cst {dimension_numbers = #tpu.dot_dimension_numbers<[1], [0], [0], [1], [0, 0, 1, 1], [], []>} : vector<64x16xf32>, vector<16x512xf32>, vector<64x512xf32> -> vector<64x512xf32>
    %c0_5 = arith.constant 0 : index
    %c0_6 = arith.constant 0 : index
    %8 = vector.load %arg5[%c0_5, %c0_6] : memref<1x512xf32, #tpu.memory_space<vmem>>, vector<1x512xf32>
    %9 = vector.broadcast %8 : vector<1x512xf32> to vector<64x512xf32>
    %10 = arith.addf %7, %9 : vector<64x512xf32>
    %11 = vector.shape_cast %10 : vector<64x512xf32> to vector<8x8x512xf32>
    %c0_7 = arith.constant 0 : index
    %c0_8 = arith.constant 0 : index
    %c0_9 = arith.constant 0 : index
    %12 = vector.load %arg11[%c0_7, %c0_8, %c0_9] : memref<8x8x512xf32, #tpu.memory_space<vmem>>, vector<8x8x512xf32>
    tpu.vector_store %arg11[%c0_7, %c0_8, %c0_9], %11 {strides = array<i32>} : memref<8x8x512xf32, #tpu.memory_space<vmem>>, vector<8x8x512xf32>,
    %c0_10 = arith.constant 0 : index
    %c0_11 = arith.constant 0 : index
    %13 = vector.load %arg9[%c0_10, %c0_11] : memref<8x128xf32, #tpu.memory_space<vmem>>, vector<8x128xf32>
    %c0_12 = arith.constant 0 : index
    %c0_13 = arith.constant 0 : index
    %14 = vector.load %arg10[%c0_12, %c0_13] : memref<8x128xf32, #tpu.memory_space<vmem>>, vector<8x128xf32>
    %c0_14 = arith.constant 0 : index
    %c0_15 = arith.constant 0 : index
    %c0_16 = arith.constant 0 : index
    %15 = vector.load %arg11[%c0_14, %c0_15, %c0_16] : memref<8x8x512xf32, #tpu.memory_space<vmem>>, vector<1x8x512xf32>
    %16 = vector.shape_cast %15 : vector<1x8x512xf32> to vector<8x512xf32>
    %c0_17 = arith.constant 0 : index
    %c0_18 = arith.constant 0 : index
    %17 = vector.load %arg4[%c0_17, %c0_18] : memref<128x512xf32, #tpu.memory_space<vmem>>, vector<128x512xf32>
    %cst_19 = arith.constant dense<0.000000e+00> : vector<8x512xf32>
    %18 = tpu.matmul %13, %17, %cst_19 {dimension_numbers = #tpu.dot_dimension_numbers<[1], [0], [0], [1], [0, 0, 1, 1], [], []>} : vector<8x128xf32>, vector<128x512xf32>, vector<8x512xf32> -> vector<8x512xf32>
    %19 = arith.addf %16, %18 : vector<8x512xf32>
    %20 = vector.extract_strided_slice %19 {offsets = [0, 0], sizes = [8, 128], strides = [1, 1]} : vector<8x512xf32> to vector<8x128xf32>
    %21 = arith.negf %20 : vector<8x128xf32>
    %22 = math.exp %21 : vector<8x128xf32>
    %cst_20 = arith.constant 1.000000e+00 : f32
    %23 = vector.broadcast %cst_20 : f32 to vector<8x128xf32>
    %24 = arith.addf %23, %22 : vector<8x128xf32>
    %25 = arith.divf %23, %24 : vector<8x128xf32>
    %26 = vector.extract_strided_slice %19 {offsets = [0, 128], sizes = [8, 128], strides = [1, 1]} : vector<8x512xf32> to vector<8x128xf32>
    %27 = arith.negf %26 : vector<8x128xf32>
    %28 = math.exp %27 : vector<8x128xf32>
    %cst_21 = arith.constant 1.000000e+00 : f32
    %29 = vector.broadcast %cst_21 : f32 to vector<8x128xf32>
    %30 = arith.addf %29, %28 : vector<8x128xf32>
    %31 = arith.divf %29, %30 : vector<8x128xf32>
    %32 = vector.extract_strided_slice %19 {offsets = [0, 256], sizes = [8, 128], strides = [1, 1]} : vector<8x512xf32> to vector<8x128xf32>
    %33 = math.tanh %32 : vector<8x128xf32>
    %34 = vector.extract_strided_slice %19 {offsets = [0, 384], sizes = [8, 128], strides = [1, 1]} : vector<8x512xf32> to vector<8x128xf32>
    %35 = arith.negf %34 : vector<8x128xf32>
    %36 = math.exp %35 : vector<8x128xf32>
    %cst_22 = arith.constant 1.000000e+00 : f32
    %37 = vector.broadcast %cst_22 : f32 to vector<8x128xf32>
    %38 = arith.addf %37, %36 : vector<8x128xf32>
    %39 = arith.divf %37, %38 : vector<8x128xf32>
    %40 = arith.mulf %31, %14 : vector<8x128xf32>
    %41 = arith.mulf %25, %33 : vector<8x128xf32>
    %42 = arith.addf %40, %41 : vector<8x128xf32>
    %43 = math.tanh %42 : vector<8x128xf32>
    %44 = arith.mulf %39, %43 : vector<8x128xf32>
    %c1 = arith.constant 1 : index
    %c0_23 = arith.constant 0 : index
    %c0_24 = arith.constant 0 : index
    %45 = vector.load %arg11[%c1, %c0_23, %c0_24] : memref<8x8x512xf32, #tpu.memory_space<vmem>>, vector<1x8x512xf32>
    %46 = vector.shape_cast %45 : vector<1x8x512xf32> to vector<8x512xf32>
    %c0_25 = arith.constant 0 : index
    %c0_26 = arith.constant 0 : index
    %47 = vector.load %arg4[%c0_25, %c0_26] : memref<128x512xf32, #tpu.memory_space<vmem>>, vector<128x512xf32>
    %cst_27 = arith.constant dense<0.000000e+00> : vector<8x512xf32>
    %48 = tpu.matmul %44, %47, %cst_27 {dimension_numbers = #tpu.dot_dimension_numbers<[1], [0], [0], [1], [0, 0, 1, 1], [], []>} : vector<8x128xf32>, vector<128x512xf32>, vector<8x512xf32> -> vector<8x512xf32>
    %49 = arith.addf %46, %48 : vector<8x512xf32>
    %50 = vector.extract_strided_slice %49 {offsets = [0, 0], sizes = [8, 128], strides = [1, 1]} : vector<8x512xf32> to vector<8x128xf32>
    %51 = arith.negf %50 : vector<8x128xf32>
    %52 = math.exp %51 : vector<8x128xf32>
    %cst_28 = arith.constant 1.000000e+00 : f32
    %53 = vector.broadcast %cst_28 : f32 to vector<8x128xf32>
    %54 = arith.addf %53, %52 : vector<8x128xf32>
    %55 = arith.divf %53, %54 : vector<8x128xf32>
    %56 = vector.extract_strided_slice %49 {offsets = [0, 128], sizes = [8, 128], strides = [1, 1]} : vector<8x512xf32> to vector<8x128xf32>
    %57 = arith.negf %56 : vector<8x128xf32>
    %58 = math.exp %57 : vector<8x128xf32>
    %cst_29 = arith.constant 1.000000e+00 : f32
    %59 = vector.broadcast %cst_29 : f32 to vector<8x128xf32>
    %60 = arith.addf %59, %58 : vector<8x128xf32>
    %61 = arith.divf %59, %60 : vector<8x128xf32>
    %62 = vector.extract_strided_slice %49 {offsets = [0, 256], sizes = [8, 128], strides = [1, 1]} : vector<8x512xf32> to vector<8x128xf32>
    %63 = math.tanh %62 : vector<8x128xf32>
    %64 = vector.extract_strided_slice %49 {offsets = [0, 384], sizes = [8, 128], strides = [1, 1]} : vector<8x512xf32> to vector<8x128xf32>
    %65 = arith.negf %64 : vector<8x128xf32>
    %66 = math.exp %65 : vector<8x128xf32>
    %cst_30 = arith.constant 1.000000e+00 : f32
    %67 = vector.broadcast %cst_30 : f32 to vector<8x128xf32>
    %68 = arith.addf %67, %66 : vector<8x128xf32>
    %69 = arith.divf %67, %68 : vector<8x128xf32>
    %70 = arith.mulf %61, %42 : vector<8x128xf32>
    %71 = arith.mulf %55, %63 : vector<8x128xf32>
    %72 = arith.addf %70, %71 : vector<8x128xf32>
    %73 = math.tanh %72 : vector<8x128xf32>
    %74 = arith.mulf %69, %73 : vector<8x128xf32>
    %c2 = arith.constant 2 : index
    %c0_31 = arith.constant 0 : index
    %c0_32 = arith.constant 0 : index
    %75 = vector.load %arg11[%c2, %c0_31, %c0_32] : memref<8x8x512xf32, #tpu.memory_space<vmem>>, vector<1x8x512xf32>
    %76 = vector.shape_cast %75 : vector<1x8x512xf32> to vector<8x512xf32>
    %c0_33 = arith.constant 0 : index
    %c0_34 = arith.constant 0 : index
    %77 = vector.load %arg4[%c0_33, %c0_34] : memref<128x512xf32, #tpu.memory_space<vmem>>, vector<128x512xf32>
    %cst_35 = arith.constant dense<0.000000e+00> : vector<8x512xf32>
    %78 = tpu.matmul %74, %77, %cst_35 {dimension_numbers = #tpu.dot_dimension_numbers<[1], [0], [0], [1], [0, 0, 1, 1], [], []>} : vector<8x128xf32>, vector<128x512xf32>, vector<8x512xf32> -> vector<8x512xf32>
    %79 = arith.addf %76, %78 : vector<8x512xf32>
    %80 = vector.extract_strided_slice %79 {offsets = [0, 0], sizes = [8, 128], strides = [1, 1]} : vector<8x512xf32> to vector<8x128xf32>
    %81 = arith.negf %80 : vector<8x128xf32>
    %82 = math.exp %81 : vector<8x128xf32>
    %cst_36 = arith.constant 1.000000e+00 : f32
    %83 = vector.broadcast %cst_36 : f32 to vector<8x128xf32>
    %84 = arith.addf %83, %82 : vector<8x128xf32>
    %85 = arith.divf %83, %84 : vector<8x128xf32>
    %86 = vector.extract_strided_slice %79 {offsets = [0, 128], sizes = [8, 128], strides = [1, 1]} : vector<8x512xf32> to vector<8x128xf32>
    %87 = arith.negf %86 : vector<8x128xf32>
    %88 = math.exp %87 : vector<8x128xf32>
    %cst_37 = arith.constant 1.000000e+00 : f32
    %89 = vector.broadcast %cst_37 : f32 to vector<8x128xf32>
    %90 = arith.addf %89, %88 : vector<8x128xf32>
    %91 = arith.divf %89, %90 : vector<8x128xf32>
    %92 = vector.extract_strided_slice %79 {offsets = [0, 256], sizes = [8, 128], strides = [1, 1]} : vector<8x512xf32> to vector<8x128xf32>
    %93 = math.tanh %92 : vector<8x128xf32>
    %94 = vector.extract_strided_slice %79 {offsets = [0, 384], sizes = [8, 128], strides = [1, 1]} : vector<8x512xf32> to vector<8x128xf32>
    %95 = arith.negf %94 : vector<8x128xf32>
    %96 = math.exp %95 : vector<8x128xf32>
    %cst_38 = arith.constant 1.000000e+00 : f32
    %97 = vector.broadcast %cst_38 : f32 to vector<8x128xf32>
    %98 = arith.addf %97, %96 : vector<8x128xf32>
    %99 = arith.divf %97, %98 : vector<8x128xf32>
    %100 = arith.mulf %91, %72 : vector<8x128xf32>
    %101 = arith.mulf %85, %93 : vector<8x128xf32>
    %102 = arith.addf %100, %101 : vector<8x128xf32>
    %103 = math.tanh %102 : vector<8x128xf32>
    %104 = arith.mulf %99, %103 : vector<8x128xf32>
    %c3 = arith.constant 3 : index
    %c0_39 = arith.constant 0 : index
    %c0_40 = arith.constant 0 : index
    %105 = vector.load %arg11[%c3, %c0_39, %c0_40] : memref<8x8x512xf32, #tpu.memory_space<vmem>>, vector<1x8x512xf32>
    %106 = vector.shape_cast %105 : vector<1x8x512xf32> to vector<8x512xf32>
    %c0_41 = arith.constant 0 : index
    %c0_42 = arith.constant 0 : index
    %107 = vector.load %arg4[%c0_41, %c0_42] : memref<128x512xf32, #tpu.memory_space<vmem>>, vector<128x512xf32>
    %cst_43 = arith.constant dense<0.000000e+00> : vector<8x512xf32>
    %108 = tpu.matmul %104, %107, %cst_43 {dimension_numbers = #tpu.dot_dimension_numbers<[1], [0], [0], [1], [0, 0, 1, 1], [], []>} : vector<8x128xf32>, vector<128x512xf32>, vector<8x512xf32> -> vector<8x512xf32>
    %109 = arith.addf %106, %108 : vector<8x512xf32>
    %110 = vector.extract_strided_slice %109 {offsets = [0, 0], sizes = [8, 128], strides = [1, 1]} : vector<8x512xf32> to vector<8x128xf32>
    %111 = arith.negf %110 : vector<8x128xf32>
    %112 = math.exp %111 : vector<8x128xf32>
    %cst_44 = arith.constant 1.000000e+00 : f32
    %113 = vector.broadcast %cst_44 : f32 to vector<8x128xf32>
    %114 = arith.addf %113, %112 : vector<8x128xf32>
    %115 = arith.divf %113, %114 : vector<8x128xf32>
    %116 = vector.extract_strided_slice %109 {offsets = [0, 128], sizes = [8, 128], strides = [1, 1]} : vector<8x512xf32> to vector<8x128xf32>
    %117 = arith.negf %116 : vector<8x128xf32>
    %118 = math.exp %117 : vector<8x128xf32>
    %cst_45 = arith.constant 1.000000e+00 : f32
    %119 = vector.broadcast %cst_45 : f32 to vector<8x128xf32>
    %120 = arith.addf %119, %118 : vector<8x128xf32>
    %121 = arith.divf %119, %120 : vector<8x128xf32>
    %122 = vector.extract_strided_slice %109 {offsets = [0, 256], sizes = [8, 128], strides = [1, 1]} : vector<8x512xf32> to vector<8x128xf32>
    %123 = math.tanh %122 : vector<8x128xf32>
    %124 = vector.extract_strided_slice %109 {offsets = [0, 384], sizes = [8, 128], strides = [1, 1]} : vector<8x512xf32> to vector<8x128xf32>
    %125 = arith.negf %124 : vector<8x128xf32>
    %126 = math.exp %125 : vector<8x128xf32>
    %cst_46 = arith.constant 1.000000e+00 : f32
    %127 = vector.broadcast %cst_46 : f32 to vector<8x128xf32>
    %128 = arith.addf %127, %126 : vector<8x128xf32>
    %129 = arith.divf %127, %128 : vector<8x128xf32>
    %130 = arith.mulf %121, %102 : vector<8x128xf32>
    %131 = arith.mulf %115, %123 : vector<8x128xf32>
    %132 = arith.addf %130, %131 : vector<8x128xf32>
    %133 = math.tanh %132 : vector<8x128xf32>
    %134 = arith.mulf %129, %133 : vector<8x128xf32>
    %c4 = arith.constant 4 : index
    %c0_47 = arith.constant 0 : index
    %c0_48 = arith.constant 0 : index
    %135 = vector.load %arg11[%c4, %c0_47, %c0_48] : memref<8x8x512xf32, #tpu.memory_space<vmem>>, vector<1x8x512xf32>
    %136 = vector.shape_cast %135 : vector<1x8x512xf32> to vector<8x512xf32>
    %c0_49 = arith.constant 0 : index
    %c0_50 = arith.constant 0 : index
    %137 = vector.load %arg4[%c0_49, %c0_50] : memref<128x512xf32, #tpu.memory_space<vmem>>, vector<128x512xf32>
    %cst_51 = arith.constant dense<0.000000e+00> : vector<8x512xf32>
    %138 = tpu.matmul %134, %137, %cst_51 {dimension_numbers = #tpu.dot_dimension_numbers<[1], [0], [0], [1], [0, 0, 1, 1], [], []>} : vector<8x128xf32>, vector<128x512xf32>, vector<8x512xf32> -> vector<8x512xf32>
    %139 = arith.addf %136, %138 : vector<8x512xf32>
    %140 = vector.extract_strided_slice %139 {offsets = [0, 0], sizes = [8, 128], strides = [1, 1]} : vector<8x512xf32> to vector<8x128xf32>
    %141 = arith.negf %140 : vector<8x128xf32>
    %142 = math.exp %141 : vector<8x128xf32>
    %cst_52 = arith.constant 1.000000e+00 : f32
    %143 = vector.broadcast %cst_52 : f32 to vector<8x128xf32>
    %144 = arith.addf %143, %142 : vector<8x128xf32>
    %145 = arith.divf %143, %144 : vector<8x128xf32>
    %146 = vector.extract_strided_slice %139 {offsets = [0, 128], sizes = [8, 128], strides = [1, 1]} : vector<8x512xf32> to vector<8x128xf32>
    %147 = arith.negf %146 : vector<8x128xf32>
    %148 = math.exp %147 : vector<8x128xf32>
    %cst_53 = arith.constant 1.000000e+00 : f32
    %149 = vector.broadcast %cst_53 : f32 to vector<8x128xf32>
    %150 = arith.addf %149, %148 : vector<8x128xf32>
    %151 = arith.divf %149, %150 : vector<8x128xf32>
    %152 = vector.extract_strided_slice %139 {offsets = [0, 256], sizes = [8, 128], strides = [1, 1]} : vector<8x512xf32> to vector<8x128xf32>
    %153 = math.tanh %152 : vector<8x128xf32>
    %154 = vector.extract_strided_slice %139 {offsets = [0, 384], sizes = [8, 128], strides = [1, 1]} : vector<8x512xf32> to vector<8x128xf32>
    %155 = arith.negf %154 : vector<8x128xf32>
    %156 = math.exp %155 : vector<8x128xf32>
    %cst_54 = arith.constant 1.000000e+00 : f32
    %157 = vector.broadcast %cst_54 : f32 to vector<8x128xf32>
    %158 = arith.addf %157, %156 : vector<8x128xf32>
    %159 = arith.divf %157, %158 : vector<8x128xf32>
    %160 = arith.mulf %151, %132 : vector<8x128xf32>
    %161 = arith.mulf %145, %153 : vector<8x128xf32>
    %162 = arith.addf %160, %161 : vector<8x128xf32>
    %163 = math.tanh %162 : vector<8x128xf32>
    %164 = arith.mulf %159, %163 : vector<8x128xf32>
    %c5 = arith.constant 5 : index
    %c0_55 = arith.constant 0 : index
    %c0_56 = arith.constant 0 : index
    %165 = vector.load %arg11[%c5, %c0_55, %c0_56] : memref<8x8x512xf32, #tpu.memory_space<vmem>>, vector<1x8x512xf32>
    %166 = vector.shape_cast %165 : vector<1x8x512xf32> to vector<8x512xf32>
    %c0_57 = arith.constant 0 : index
    %c0_58 = arith.constant 0 : index
    %167 = vector.load %arg4[%c0_57, %c0_58] : memref<128x512xf32, #tpu.memory_space<vmem>>, vector<128x512xf32>
    %cst_59 = arith.constant dense<0.000000e+00> : vector<8x512xf32>
    %168 = tpu.matmul %164, %167, %cst_59 {dimension_numbers = #tpu.dot_dimension_numbers<[1], [0], [0], [1], [0, 0, 1, 1], [], []>} : vector<8x128xf32>, vector<128x512xf32>, vector<8x512xf32> -> vector<8x512xf32>
    %169 = arith.addf %166, %168 : vector<8x512xf32>
    %170 = vector.extract_strided_slice %169 {offsets = [0, 0], sizes = [8, 128], strides = [1, 1]} : vector<8x512xf32> to vector<8x128xf32>
    %171 = arith.negf %170 : vector<8x128xf32>
    %172 = math.exp %171 : vector<8x128xf32>
    %cst_60 = arith.constant 1.000000e+00 : f32
    %173 = vector.broadcast %cst_60 : f32 to vector<8x128xf32>
    %174 = arith.addf %173, %172 : vector<8x128xf32>
    %175 = arith.divf %173, %174 : vector<8x128xf32>
    %176 = vector.extract_strided_slice %169 {offsets = [0, 128], sizes = [8, 128], strides = [1, 1]} : vector<8x512xf32> to vector<8x128xf32>
    %177 = arith.negf %176 : vector<8x128xf32>
    %178 = math.exp %177 : vector<8x128xf32>
    %cst_61 = arith.constant 1.000000e+00 : f32
    %179 = vector.broadcast %cst_61 : f32 to vector<8x128xf32>
    %180 = arith.addf %179, %178 : vector<8x128xf32>
    %181 = arith.divf %179, %180 : vector<8x128xf32>
    %182 = vector.extract_strided_slice %169 {offsets = [0, 256], sizes = [8, 128], strides = [1, 1]} : vector<8x512xf32> to vector<8x128xf32>
    %183 = math.tanh %182 : vector<8x128xf32>
    %184 = vector.extract_strided_slice %169 {offsets = [0, 384], sizes = [8, 128], strides = [1, 1]} : vector<8x512xf32> to vector<8x128xf32>
    %185 = arith.negf %184 : vector<8x128xf32>
    %186 = math.exp %185 : vector<8x128xf32>
    %cst_62 = arith.constant 1.000000e+00 : f32
    %187 = vector.broadcast %cst_62 : f32 to vector<8x128xf32>
    %188 = arith.addf %187, %186 : vector<8x128xf32>
    %189 = arith.divf %187, %188 : vector<8x128xf32>
    %190 = arith.mulf %181, %162 : vector<8x128xf32>
    %191 = arith.mulf %175, %183 : vector<8x128xf32>
    %192 = arith.addf %190, %191 : vector<8x128xf32>
    %193 = math.tanh %192 : vector<8x128xf32>
    %194 = arith.mulf %189, %193 : vector<8x128xf32>
    %c6 = arith.constant 6 : index
    %c0_63 = arith.constant 0 : index
    %c0_64 = arith.constant 0 : index
    %195 = vector.load %arg11[%c6, %c0_63, %c0_64] : memref<8x8x512xf32, #tpu.memory_space<vmem>>, vector<1x8x512xf32>
    %196 = vector.shape_cast %195 : vector<1x8x512xf32> to vector<8x512xf32>
    %c0_65 = arith.constant 0 : index
    %c0_66 = arith.constant 0 : index
    %197 = vector.load %arg4[%c0_65, %c0_66] : memref<128x512xf32, #tpu.memory_space<vmem>>, vector<128x512xf32>
    %cst_67 = arith.constant dense<0.000000e+00> : vector<8x512xf32>
    %198 = tpu.matmul %194, %197, %cst_67 {dimension_numbers = #tpu.dot_dimension_numbers<[1], [0], [0], [1], [0, 0, 1, 1], [], []>} : vector<8x128xf32>, vector<128x512xf32>, vector<8x512xf32> -> vector<8x512xf32>
    %199 = arith.addf %196, %198 : vector<8x512xf32>
    %200 = vector.extract_strided_slice %199 {offsets = [0, 0], sizes = [8, 128], strides = [1, 1]} : vector<8x512xf32> to vector<8x128xf32>
    %201 = arith.negf %200 : vector<8x128xf32>
    %202 = math.exp %201 : vector<8x128xf32>
    %cst_68 = arith.constant 1.000000e+00 : f32
    %203 = vector.broadcast %cst_68 : f32 to vector<8x128xf32>
    %204 = arith.addf %203, %202 : vector<8x128xf32>
    %205 = arith.divf %203, %204 : vector<8x128xf32>
    %206 = vector.extract_strided_slice %199 {offsets = [0, 128], sizes = [8, 128], strides = [1, 1]} : vector<8x512xf32> to vector<8x128xf32>
    %207 = arith.negf %206 : vector<8x128xf32>
    %208 = math.exp %207 : vector<8x128xf32>
    %cst_69 = arith.constant 1.000000e+00 : f32
    %209 = vector.broadcast %cst_69 : f32 to vector<8x128xf32>
    %210 = arith.addf %209, %208 : vector<8x128xf32>
    %211 = arith.divf %209, %210 : vector<8x128xf32>
    %212 = vector.extract_strided_slice %199 {offsets = [0, 256], sizes = [8, 128], strides = [1, 1]} : vector<8x512xf32> to vector<8x128xf32>
    %213 = math.tanh %212 : vector<8x128xf32>
    %214 = vector.extract_strided_slice %199 {offsets = [0, 384], sizes = [8, 128], strides = [1, 1]} : vector<8x512xf32> to vector<8x128xf32>
    %215 = arith.negf %214 : vector<8x128xf32>
    %216 = math.exp %215 : vector<8x128xf32>
    %cst_70 = arith.constant 1.000000e+00 : f32
    %217 = vector.broadcast %cst_70 : f32 to vector<8x128xf32>
    %218 = arith.addf %217, %216 : vector<8x128xf32>
    %219 = arith.divf %217, %218 : vector<8x128xf32>
    %220 = arith.mulf %211, %192 : vector<8x128xf32>
    %221 = arith.mulf %205, %213 : vector<8x128xf32>
    %222 = arith.addf %220, %221 : vector<8x128xf32>
    %223 = math.tanh %222 : vector<8x128xf32>
    %224 = arith.mulf %219, %223 : vector<8x128xf32>
    %c7 = arith.constant 7 : index
    %c0_71 = arith.constant 0 : index
    %c0_72 = arith.constant 0 : index
    %225 = vector.load %arg11[%c7, %c0_71, %c0_72] : memref<8x8x512xf32, #tpu.memory_space<vmem>>, vector<1x8x512xf32>
    %226 = vector.shape_cast %225 : vector<1x8x512xf32> to vector<8x512xf32>
    %c0_73 = arith.constant 0 : index
    %c0_74 = arith.constant 0 : index
    %227 = vector.load %arg4[%c0_73, %c0_74] : memref<128x512xf32, #tpu.memory_space<vmem>>, vector<128x512xf32>
    %cst_75 = arith.constant dense<0.000000e+00> : vector<8x512xf32>
    %228 = tpu.matmul %224, %227, %cst_75 {dimension_numbers = #tpu.dot_dimension_numbers<[1], [0], [0], [1], [0, 0, 1, 1], [], []>} : vector<8x128xf32>, vector<128x512xf32>, vector<8x512xf32> -> vector<8x512xf32>
    %229 = arith.addf %226, %228 : vector<8x512xf32>
    %230 = vector.extract_strided_slice %229 {offsets = [0, 0], sizes = [8, 128], strides = [1, 1]} : vector<8x512xf32> to vector<8x128xf32>
    %231 = arith.negf %230 : vector<8x128xf32>
    %232 = math.exp %231 : vector<8x128xf32>
    %cst_76 = arith.constant 1.000000e+00 : f32
    %233 = vector.broadcast %cst_76 : f32 to vector<8x128xf32>
    %234 = arith.addf %233, %232 : vector<8x128xf32>
    %235 = arith.divf %233, %234 : vector<8x128xf32>
    %236 = vector.extract_strided_slice %229 {offsets = [0, 128], sizes = [8, 128], strides = [1, 1]} : vector<8x512xf32> to vector<8x128xf32>
    %237 = arith.negf %236 : vector<8x128xf32>
    %238 = math.exp %237 : vector<8x128xf32>
    %cst_77 = arith.constant 1.000000e+00 : f32
    %239 = vector.broadcast %cst_77 : f32 to vector<8x128xf32>
    %240 = arith.addf %239, %238 : vector<8x128xf32>
    %241 = arith.divf %239, %240 : vector<8x128xf32>
    %242 = vector.extract_strided_slice %229 {offsets = [0, 256], sizes = [8, 128], strides = [1, 1]} : vector<8x512xf32> to vector<8x128xf32>
    %243 = math.tanh %242 : vector<8x128xf32>
    %244 = vector.extract_strided_slice %229 {offsets = [0, 384], sizes = [8, 128], strides = [1, 1]} : vector<8x512xf32> to vector<8x128xf32>
    %245 = arith.negf %244 : vector<8x128xf32>
    %246 = math.exp %245 : vector<8x128xf32>
    %cst_78 = arith.constant 1.000000e+00 : f32
    %247 = vector.broadcast %cst_78 : f32 to vector<8x128xf32>
    %248 = arith.addf %247, %246 : vector<8x128xf32>
    %249 = arith.divf %247, %248 : vector<8x128xf32>
    %250 = arith.mulf %241, %222 : vector<8x128xf32>
    %251 = arith.mulf %235, %243 : vector<8x128xf32>
    %252 = arith.addf %250, %251 : vector<8x128xf32>
    %253 = math.tanh %252 : vector<8x128xf32>
    %254 = arith.mulf %249, %253 : vector<8x128xf32>
    %c0_79 = arith.constant 0 : index
    %c0_80 = arith.constant 0 : index
    %255 = vector.load %arg9[%c0_79, %c0_80] : memref<8x128xf32, #tpu.memory_space<vmem>>, vector<8x128xf32>
    tpu.vector_store %arg9[%c0_79, %c0_80], %254 {strides = array<i32>} : memref<8x128xf32, #tpu.memory_space<vmem>>, vector<8x128xf32>,
    %c0_81 = arith.constant 0 : index
    %c0_82 = arith.constant 0 : index
    %256 = vector.load %arg10[%c0_81, %c0_82] : memref<8x128xf32, #tpu.memory_space<vmem>>, vector<8x128xf32>
    tpu.vector_store %arg10[%c0_81, %c0_82], %252 {strides = array<i32>} : memref<8x128xf32, #tpu.memory_space<vmem>>, vector<8x128xf32>,
    %c0_i32_83 = arith.constant 0 : i32
    %257 = arith.cmpi eq, %arg1, %c0_i32_83 : i32
    %258 = arith.extui %257 : i1 to i32
    %c0_i32_84 = arith.constant 0 : i32
    %259 = arith.cmpi ne, %258, %c0_i32_84 : i32
    scf.if %259 {
      %c0_85 = arith.constant 0 : index
      %c0_86 = arith.constant 0 : index
      %260 = vector.load %arg6[%c0_85, %c0_86] : memref<128x128xf32, #tpu.memory_space<vmem>>, vector<128x128xf32>
      %cst_87 = arith.constant dense<0.000000e+00> : vector<8x128xf32>
      %261 = tpu.matmul %254, %260, %cst_87 {dimension_numbers = #tpu.dot_dimension_numbers<[1], [0], [0], [1], [0, 0, 1, 1], [], []>} : vector<8x128xf32>, vector<128x128xf32>, vector<8x128xf32> -> vector<8x128xf32>
      %c0_88 = arith.constant 0 : index
      %c0_89 = arith.constant 0 : index
      %262 = vector.load %arg7[%c0_88, %c0_89] : memref<1x128xf32, #tpu.memory_space<vmem>>, vector<1x128xf32>
      %263 = vector.broadcast %262 : vector<1x128xf32> to vector<8x128xf32>
      %264 = arith.addf %261, %263 : vector<8x128xf32>
      %c0_90 = arith.constant 0 : index
      %c0_91 = arith.constant 0 : index
      %265 = vector.load %arg8[%c0_90, %c0_91] : memref<8x128xf32, #tpu.memory_space<vmem>>, vector<8x128xf32>
      tpu.vector_store %arg8[%c0_90, %c0_91], %264 {strides = array<i32>} : memref<8x128xf32, #tpu.memory_space<vmem>>, vector<8x128xf32>,
    } else {
    }
    return
  }
  func.func @transform_0(%arg0: i32, %arg1: i32) -> (i32, i32, i32) {
    %c0_i32 = arith.constant 0 : i32
    %c0_i32_0 = arith.constant 0 : i32
    return %arg0, %arg1, %c0_i32 : i32, i32, i32
  }
  func.func @transform_1(%arg0: i32, %arg1: i32) -> (i32, i32) {
    %c0_i32 = arith.constant 0 : i32
    %c0_i32_0 = arith.constant 0 : i32
    %c0_i32_1 = arith.constant 0 : i32
    return %c0_i32, %c0_i32_0 : i32, i32
  }
  func.func @transform_2(%arg0: i32, %arg1: i32) -> (i32, i32) {
    %c0_i32 = arith.constant 0 : i32
    %c0_i32_0 = arith.constant 0 : i32
    %c0_i32_1 = arith.constant 0 : i32
    return %c0_i32, %c0_i32_0 : i32, i32
  }
  func.func @transform_3(%arg0: i32, %arg1: i32) -> (i32, i32) {
    %c0_i32 = arith.constant 0 : i32
    %c0_i32_0 = arith.constant 0 : i32
    %c0_i32_1 = arith.constant 0 : i32
    return %c0_i32, %c0_i32_0 : i32, i32
  }
  func.func @transform_4(%arg0: i32, %arg1: i32) -> (i32, i32) {
    %c0_i32 = arith.constant 0 : i32
    %c0_i32_0 = arith.constant 0 : i32
    %c0_i32_1 = arith.constant 0 : i32
    return %c0_i32, %c0_i32_0 : i32, i32
  }
  func.func @transform_5(%arg0: i32, %arg1: i32) -> (i32, i32) {
    %c0_i32 = arith.constant 0 : i32
    %c0_i32_0 = arith.constant 0 : i32
    %c0_i32_1 = arith.constant 0 : i32
    return %c0_i32, %c0_i32_0 : i32, i32
  }
  func.func @transform_6(%arg0: i32, %arg1: i32) -> (i32, i32) {
    %c0_i32 = arith.constant 0 : i32
    %c0_i32_0 = arith.constant 0 : i32
    return %arg0, %c0_i32 : i32, i32
  }
}

</mosaic_0001>

<llo_original>
// kernel: tpu_custom_call.1
$region0: #{tpu_custom_call.1}
  #allocation0 [shape = 'u32[]', space=smem, size = 0x4, offset = 0x4, fixed_abs, tag = 'smem constant byte address 0x4 - core index']
  #allocation1 [shape = 'u32[144,128]{1,0:T(1,128)}', space=vmem, size = 0x12000, scoped, tag = 'internal scratch']
  #allocation2 [shape = 'f32[8,128]{1,0:T(8,128)}', space=vmem, size = 0x1000, scoped, tag = 'scratch operand']
  #allocation3 [shape = 'f32[8,128]{1,0:T(8,128)}', space=vmem, size = 0x1000, scoped, tag = 'scratch operand']
  #allocation4 [shape = 'f32[8,8,512]{2,1,0:T(8,128)}', space=vmem, size = 0x20000, scoped, tag = 'scratch operand']
  %s0 = inlined_call_operand.hbm [shape: f32[8,8,16], index: 0, kind: input, shape index: {}]
  %s1 = inlined_call_operand.hbm [shape: f32[16,512], index: 1, kind: input, shape index: {}]
  %s2 = inlined_call_operand.hbm [shape: f32[128,512], index: 2, kind: input, shape index: {}]
  %s3 = inlined_call_operand.vmem [shape: f32[1,512], index: 3, kind: input, shape index: {}]
  %s4 = inlined_call_operand.hbm [shape: f32[128,128], index: 4, kind: input, shape index: {}]
  %s5 = inlined_call_operand.vmem [shape: f32[1,128], index: 5, kind: input, shape index: {}]
  %s6 = inlined_call_operand.hbm [shape: f32[8,128], index: 6, kind: output, shape index: {}]
  %s7 = sld [smem:[#allocation0]]
  $region58: #{tpu_custom_call.1} parent=0
    _
  %s9 = ssub.s32 1, %s7
  %s10 = scalar_select 0, %s9, %s7
  $region1: #{tpu_custom_call.1} parent=0
    #allocation5 [shape = 'u8[32768]{0}', space=vmem, size = 0x8000, scoped, tag = 'input window, operand 0, single buffered']
    #allocation6 [shape = 's32[1]{0}', space=sflag, size = 0x4, scoped, tag = 'scoped memory for tpu_custom_call.1']
    #allocation7 [shape = 's32[1]{0}', space=sflag, size = 0x4, scoped, tag = 'scoped memory for tpu_custom_call.1']
    #allocation8 [shape = 'u8[32768]{0}', space=vmem, size = 0x8000, scoped, tag = 'input window, operand 1, single buffered']
    #allocation9 [shape = 's32[1]{0}', space=sflag, size = 0x4, scoped, tag = 'scoped memory for tpu_custom_call.1']
    #allocation10 [shape = 'u8[262144]{0}', space=vmem, size = 0x40000, scoped, tag = 'input window, operand 2, single buffered']
    #allocation11 [shape = 'u8[65536]{0}', space=vmem, size = 0x10000, scoped, tag = 'input window, operand 4, single buffered']
    #allocation12 [shape = 's32[1]{0}', space=sflag, size = 0x4, scoped, tag = 'scoped memory for tpu_custom_call.1']
    #allocation13 [shape = 'u8[4096]{0}', space=vmem, size = 0x1000, scoped, tag = 'output window, operand 0, single buffered']
    %11 = vsyncpa [#allocation6], 0
    %12 = vsyncpa [#allocation9], 0
    %13 = vsyncpa [#allocation12], 0
    %14 = vsyncpa [#allocation7], 0
    // Predicated region
    $region2: #{tpu_custom_call.1} parent=1 // pred_check
      _
    $region3: #{tpu_custom_call.1} parent=1 // pred_check_branch
      %16 = sbr.rel (0) target = $region5
    $region4: #{tpu_custom_call.1} parent=1 // pred_region
      %s18 = ssub.s32 1024, 1024
      %19 = vsyncadd [#allocation6], %s18
      %s20 = sshll.u32 [#allocation5], 4
      %s21 = int_to_ptr.vmem [resolvable:$true] %s20
      %26 = dma.hbm_to_vmem [thread:$0]  %s0, 1024, %s21, [#allocation6], 128, 128, 8
    $region5: #{tpu_custom_call.1} parent=1 // pred_fallthru
      _
    // Predicated region
    $region6: #{tpu_custom_call.1} parent=1 // pred_check
      _
    $region7: #{tpu_custom_call.1} parent=1 // pred_check_branch
      %28 = sbr.rel (0) target = $region9
    $region8: #{tpu_custom_call.1} parent=1 // pred_region
      %s30 = ssub.s32 1024, 1024
      %31 = vsyncadd [#allocation9], %s30
      %s32 = sshll.u32 [#allocation8], 4
      %s33 = int_to_ptr.vmem [resolvable:$true] %s32
      %38 = dma.hbm_to_vmem [thread:$0]  %s1, 1024, %s33, [#allocation9], 512, 512, 32
    $region9: #{tpu_custom_call.1} parent=1 // pred_fallthru
      _
    // Predicated region
    $region10: #{tpu_custom_call.1} parent=1 // pred_check
      _
    $region11: #{tpu_custom_call.1} parent=1 // pred_check_branch
      %40 = sbr.rel (0) target = $region13
    $region12: #{tpu_custom_call.1} parent=1 // pred_region
      %s42 = ssub.s32 8192, 8192
      %43 = vsyncadd [#allocation9], %s42
      %s44 = sshll.u32 [#allocation10], 4
      %s45 = int_to_ptr.vmem [resolvable:$true] %s44
      %50 = dma.hbm_to_vmem [thread:$0]  %s2, 8192, %s45, [#allocation9], 512, 512, 32
    $region13: #{tpu_custom_call.1} parent=1 // pred_fallthru
      _
    // Predicated region
    $region14: #{tpu_custom_call.1} parent=1 // pred_check
      _
    $region15: #{tpu_custom_call.1} parent=1 // pred_check_branch
      %52 = sbr.rel (0) target = $region17
    $region16: #{tpu_custom_call.1} parent=1 // pred_region
      _
    $region17: #{tpu_custom_call.1} parent=1 // pred_fallthru
      _
    // Predicated region
    $region18: #{tpu_custom_call.1} parent=1 // pred_check
      _
    $region19: #{tpu_custom_call.1} parent=1 // pred_check_branch
      %54 = sbr.rel (0) target = $region21
    $region20: #{tpu_custom_call.1} parent=1 // pred_region
      %s56 = ssub.s32 2048, 2048
      %57 = vsyncadd [#allocation12], %s56
      %s58 = sshll.u32 [#allocation11], 4
      %s59 = int_to_ptr.vmem [resolvable:$true] %s58
      %64 = dma.hbm_to_vmem [thread:$0]  %s4, 2048, %s59, [#allocation12], 128, 128, 8
    $region21: #{tpu_custom_call.1} parent=1 // pred_fallthru
      _
    // Predicated region
    $region22: #{tpu_custom_call.1} parent=1 // pred_check
      _
    $region23: #{tpu_custom_call.1} parent=1 // pred_check_branch
      %66 = sbr.rel (0) target = $region25
    $region24: #{tpu_custom_call.1} parent=1 // pred_region
      _
    $region25: #{tpu_custom_call.1} parent=1 // pred_fallthru
      _
    // Predicated region
    $region26: #{tpu_custom_call.1} parent=1 // pred_check
      _
    $region27: #{tpu_custom_call.1} parent=1 // pred_check_branch
      %68 = sbr.rel (0) target = $region29
    $region28: #{tpu_custom_call.1} parent=1 // pred_region
      %69 = dma.done [#allocation6], 1024
    $region29: #{tpu_custom_call.1} parent=1 // pred_fallthru
      _
    // Predicated region
    $region30: #{tpu_custom_call.1} parent=1 // pred_check
      _
    $region31: #{tpu_custom_call.1} parent=1 // pred_check_branch
      %71 = sbr.rel (0) target = $region33
    $region32: #{tpu_custom_call.1} parent=1 // pred_region
      %72 = dma.done [#allocation9], 1024
    $region33: #{tpu_custom_call.1} parent=1 // pred_fallthru
      _
    // Predicated region
    $region34: #{tpu_custom_call.1} parent=1 // pred_check
      _
    $region35: #{tpu_custom_call.1} parent=1 // pred_check_branch
      %74 = sbr.rel (0) target = $region37
    $region36: #{tpu_custom_call.1} parent=1 // pred_region
      %75 = dma.done [#allocation9], 8192
    $region37: #{tpu_custom_call.1} parent=1 // pred_fallthru
      _
    // Predicated region
    $region38: #{tpu_custom_call.1} parent=1 // pred_check
      _
    $region39: #{tpu_custom_call.1} parent=1 // pred_check_branch
      %77 = sbr.rel (0) target = $region41
    $region40: #{tpu_custom_call.1} parent=1 // pred_region
      %78 = dma.done [#allocation12], 2048
    $region41: #{tpu_custom_call.1} parent=1 // pred_fallthru
      _
    %p79 = scmp.eq.s32.totalorder 0, 0
    // Predicated region
    $region42: #{tpu_custom_call.1} parent=1 // pred_check
      %p80 = pneg %p79
    $region43: #{tpu_custom_call.1} parent=1 // pred_check_branch
      %82 = sbr.rel (%p80) target = $region45
    $region44: #{tpu_custom_call.1} parent=1 // pred_region
      %83 = vst [vmem:[#allocation2] sm:$0xff] 0.0
      %84 = vst [vmem:[#allocation3] sm:$0xff] 0.0
    $region45: #{tpu_custom_call.1} parent=1 // pred_fallthru
      _
    %v85 = vld [vmem:[#allocation5] sm:$0xff]
    %v86 = vld [vmem:[#allocation5 + $0x8] sm:$0xff]
    %v87 = vld [vmem:[#allocation5 + $0x10] sm:$0xff]
    %v88 = vld [vmem:[#allocation5 + $0x18] sm:$0xff]
    %v89 = vld [vmem:[#allocation5 + $0x20] sm:$0xff]
    %v90 = vld [vmem:[#allocation5 + $0x28] sm:$0xff]
    %v91 = vld [vmem:[#allocation5 + $0x30] sm:$0xff]
    %v92 = vld [vmem:[#allocation5 + $0x38] sm:$0xff]
    %v93 = vcombine.low %v85, %v87
    %v94 = vcombine.high %v85, %v87
    %v96 = vunpack.c.l.s4 1983009808
    %v97 = vunpack.c.0.s8 %v96
    %v98 = vlaneseq
    %v99 = vshrl.u32 %v98, 7
    %v100 = vsub.s32 %v97, %v99
    %v101 = vrot.slane %v93, %v100
    %v103 = vunpack.c.l.s4 1983009808
    %v104 = vunpack.c.0.s8 %v103
    %v105 = vlaneseq
    %v106 = vshrl.u32 %v105, 7
    %v107 = vsub.s32 %v104, %v106
    %v108 = vrot.slane %v94, %v107
    %v109 = vcombine.low %v86, %v88
    %v110 = vcombine.high %v86, %v88
    %v112 = vunpack.c.l.s4 1983009808
    %v113 = vunpack.c.0.s8 %v112
    %v114 = vlaneseq
    %v115 = vshrl.u32 %v114, 7
    %v116 = vsub.s32 %v113, %v115
    %v117 = vrot.slane %v109, %v116
    %v119 = vunpack.c.l.s4 1983009808
    %v120 = vunpack.c.0.s8 %v119
    %v121 = vlaneseq
    %v122 = vshrl.u32 %v121, 7
    %v123 = vsub.s32 %v120, %v122
    %v124 = vrot.slane %v110, %v123
    %v125 = vcombine.low %v89, %v91
    %v126 = vcombine.high %v89, %v91
    %v128 = vunpack.c.l.s4 1983009808
    %v129 = vunpack.c.0.s8 %v128
    %v130 = vlaneseq
    %v131 = vshrl.u32 %v130, 7
    %v132 = vsub.s32 %v129, %v131
    %v133 = vrot.slane %v125, %v132
    %v135 = vunpack.c.l.s4 1983009808
    %v136 = vunpack.c.0.s8 %v135
    %v137 = vlaneseq
    %v138 = vshrl.u32 %v137, 7
    %v139 = vsub.s32 %v136, %v138
    %v140 = vrot.slane %v126, %v139
    %v141 = vcombine.low %v90, %v92
    %v142 = vcombine.high %v90, %v92
    %v144 = vunpack.c.l.s4 1983009808
    %v145 = vunpack.c.0.s8 %v144
    %v146 = vlaneseq
    %v147 = vshrl.u32 %v146, 7
    %v148 = vsub.s32 %v145, %v147
    %v149 = vrot.slane %v141, %v148
    %v151 = vunpack.c.l.s4 1983009808
    %v152 = vunpack.c.0.s8 %v151
    %v153 = vlaneseq
    %v154 = vshrl.u32 %v153, 7
    %v155 = vsub.s32 %v152, %v154
    %v156 = vrot.slane %v142, %v155
    %v157 = vcombine.low %v101, %v117
    %v158 = vcombine.high %v101, %v117
    %v160 = vunpack.c.l.s4 1934713408
    %v161 = vunpack.c.0.s8 %v160
    %v162 = vlaneseq
    %v163 = vshrl.u32 %v162, 7
    %v164 = vsub.s32 %v161, %v163
    %v165 = vrot.slane %v157, %v164
    %v167 = vunpack.c.l.s4 1934713408
    %v168 = vunpack.c.0.s8 %v167
    %v169 = vlaneseq
    %v170 = vshrl.u32 %v169, 7
    %v171 = vsub.s32 %v168, %v170
    %v172 = vrot.slane %v158, %v171
    %v173 = vcombine.low %v108, %v124
    %v174 = vcombine.high %v108, %v124
    %v176 = vunpack.c.l.s4 1934713408
    %v177 = vunpack.c.0.s8 %v176
    %v178 = vlaneseq
    %v179 = vshrl.u32 %v178, 7
    %v180 = vsub.s32 %v177, %v179
    %v181 = vrot.slane %v173, %v180
    %v183 = vunpack.c.l.s4 1934713408
    %v184 = vunpack.c.0.s8 %v183
    %v185 = vlaneseq
    %v186 = vshrl.u32 %v185, 7
    %v187 = vsub.s32 %v184, %v186
    %v188 = vrot.slane %v174, %v187
    %v189 = vcombine.low %v133, %v149
    %v190 = vcombine.high %v133, %v149
    %v192 = vunpack.c.l.s4 1934713408
    %v193 = vunpack.c.0.s8 %v192
    %v194 = vlaneseq
    %v195 = vshrl.u32 %v194, 7
    %v196 = vsub.s32 %v193, %v195
    %v197 = vrot.slane %v189, %v196
    %v199 = vunpack.c.l.s4 1934713408
    %v200 = vunpack.c.0.s8 %v199
    %v201 = vlaneseq
    %v202 = vshrl.u32 %v201, 7
    %v203 = vsub.s32 %v200, %v202
    %v204 = vrot.slane %v190, %v203
    %v205 = vcombine.low %v140, %v156
    %v206 = vcombine.high %v140, %v156
    %v208 = vunpack.c.l.s4 1934713408
    %v209 = vunpack.c.0.s8 %v208
    %v210 = vlaneseq
    %v211 = vshrl.u32 %v210, 7
    %v212 = vsub.s32 %v209, %v211
    %v213 = vrot.slane %v205, %v212
    %v215 = vunpack.c.l.s4 1934713408
    %v216 = vunpack.c.0.s8 %v215
    %v217 = vlaneseq
    %v218 = vshrl.u32 %v217, 7
    %v219 = vsub.s32 %v216, %v218
    %v220 = vrot.slane %v206, %v219
    %v221 = vcombine.low %v165, %v197
    %v222 = vcombine.high %v165, %v197
    %v223 = vcombine.low %v172, %v204
    %v224 = vcombine.high %v172, %v204
    %v225 = vcombine.low %v181, %v213
    %v226 = vcombine.high %v181, %v213
    %v227 = vcombine.low %v188, %v220
    %v228 = vcombine.high %v188, %v220
    %v229 = vld [vmem:[#allocation8] sm:$0xff]
    %v230 = vld [vmem:[#allocation8 + $0x8] sm:$0xff]
    %v231 = vld [vmem:[#allocation8 + $0x10] sm:$0xff]
    %v232 = vld [vmem:[#allocation8 + $0x18] sm:$0xff]
    %v233 = vld [vmem:[#allocation8 + $0x20] sm:$0xff]
    %v234 = vld [vmem:[#allocation8 + $0x28] sm:$0xff]
    %v235 = vld [vmem:[#allocation8 + $0x30] sm:$0xff]
    %v236 = vld [vmem:[#allocation8 + $0x38] sm:$0xff]
    %v237 = vld [vmem:[%s3] sm:$0xf]
    %v239 = vlaneseq
    %v240 = vshrl.u32 %v239, 7
    %v241 = vsub.s32 0, %v240
    %v242 = vrot.slane %v237, %v241
    %v243 = vlaneseq
    %v244 = vshrl.u32 %v243, 7
    %v245 = vsub.s32 1, %v244
    %v246 = vrot.slane %v237, %v245
    %v247 = vlaneseq
    %v248 = vshrl.u32 %v247, 7
    %v249 = vsub.s32 2, %v248
    %v250 = vrot.slane %v237, %v249
    %v251 = vlaneseq
    %v252 = vshrl.u32 %v251, 7
    %v253 = vsub.s32 3, %v252
    %v254 = vrot.slane %v237, %v253
    %vm259 = vcmask 130048
    %v261 = vsel %vm259, %v221, 0
    %v264 = vsel %vm259, %v222, 0
    %v267 = vsel %vm259, %v223, 0
    %v270 = vsel %vm259, %v224, 0
    %v273 = vsel %vm259, %v225, 0
    %v276 = vsel %vm259, %v226, 0
    %v279 = vsel %vm259, %v227, 0
    %v282 = vsel %vm259, %v228, 0
    %284 = vmatprep.subr.mxu0 %v230
    %285 = vmatpush1.msra.mxu0 %v229
    %286 = vmatprep.subr.mxu0 %v234
    %287 = vmatpush1.msra.mxu0 %v233
    %288 = vmatprep.subr.mxu0 0.0
    %289 = vmatpush1.msra.mxu0 0.0
    %290 = vmatprep.subr.mxu0 0.0
    %291 = vmatpush1.msra.mxu0 0.0
    %292 = vmatprep.subr.mxu0 0.0
    %293 = vmatpush1.msra.mxu0 0.0
    %294 = vmatprep.subr.mxu0 0.0
    %295 = vmatpush1.msra.mxu0 0.0
    %296 = vmatprep.subr.mxu0 0.0
    %297 = vmatpush1.msra.mxu0 0.0
    %298 = vmatprep.subr.mxu0 0.0
    %299 = vmatpush1.msra.mxu0 0.0
    %300 = vmatprep.subr.mxu0 0.0
    %301 = vmatpush1.msra.mxu0 0.0
    %302 = vmatprep.subr.mxu0 0.0
    %303 = vmatpush1.msra.mxu0 0.0
    %304 = vmatprep.subr.mxu0 0.0
    %305 = vmatpush1.msra.mxu0 0.0
    %306 = vmatprep.subr.mxu0 0.0
    %307 = vmatpush1.msra.mxu0 0.0
    %308 = vmatprep.subr.mxu0 0.0
    %309 = vmatpush1.msra.mxu0 0.0
    %310 = vmatprep.subr.mxu0 0.0
    %311 = vmatpush1.msra.mxu0 0.0
    %312 = vmatprep.subr.mxu0 0.0
    %313 = vmatpush1.msra.mxu0 0.0
    %314 = vmatprep.subr.mxu0 0.0
    %315 = vmatpush1.msra.mxu0 0.0
    %316 = vmatprep.subr.mxu0 0.0
    %317 = vmatpush1.msra.mxu0 0.0
    %318 = vmatprep.subr.mxu0 0.0
    %319 = vmatpush1.msra.mxu0 0.0
    %320 = vmatprep.subr.mxu0 0.0
    %321 = vmatpush1.msra.mxu0 0.0
    %322 = vmatprep.subr.mxu0 0.0
    %323 = vmatpush1.msra.mxu0 0.0
    %324 = vmatprep.subr.mxu0 0.0
    %325 = vmatpush1.msra.mxu0 0.0
    %326 = vmatprep.subr.mxu0 0.0
    %327 = vmatpush1.msra.mxu0 0.0
    %328 = vmatprep.subr.mxu0 0.0
    %329 = vmatpush1.msra.mxu0 0.0
    %330 = vmatprep.subr.mxu0 0.0
    %331 = vmatpush1.msra.mxu0 0.0
    %332 = vmatprep.subr.mxu0 0.0
    %333 = vmatpush1.msra.mxu0 0.0
    %334 = vmatprep.subr.mxu0 0.0
    %335 = vmatpush1.msra.mxu0 0.0
    %336 = vmatprep.subr.mxu0 0.0
    %337 = vmatpush1.msra.mxu0 0.0
    %338 = vmatprep.subr.mxu0 0.0
    %339 = vmatpush1.msra.mxu0 0.0
    %340 = vmatprep.subr.mxu0 0.0
    %341 = vmatpush1.msra.mxu0 0.0
    %342 = vmatprep.subr.mxu0 0.0
    %343 = vmatpush1.msra.mxu0 0.0
    %344 = vmatprep.subr.mxu0 0.0
    %345 = vmatpush1.msra.mxu0 0.0
    %346 = vmatprep.subr.mxu0 0.0
    %347 = vmatpush1.msra.mxu0 0.0
    %348 = vmatprep.mubr.f32.mxu0 0.0
    %349 = vmatmul.mubr.f32.gmra.mrb[0].mxu0 %v261
    %v350 = vpop.f32.mrb[0].mxu0
    %v351 = vadd.f32 %v242, %v350
    %v352 = vpop.f32.mrb[0].mxu0
    %v353 = vadd.f32 %v246, %v352
    %354 = vmatprep.mubr.f32.mxu0 0.0
    %355 = vmatmul.mubr.f32.gmra.mrb[0].mxu0 %v264
    %v356 = vpop.f32.mrb[0].mxu0
    %v357 = vadd.f32 %v242, %v356
    %v358 = vpop.f32.mrb[0].mxu0
    %v359 = vadd.f32 %v246, %v358
    %360 = vmatprep.mubr.f32.mxu0 0.0
    %361 = vmatmul.mubr.f32.gmra.mrb[0].mxu0 %v267
    %v362 = vpop.f32.mrb[0].mxu0
    %v363 = vadd.f32 %v242, %v362
    %v364 = vpop.f32.mrb[0].mxu0
    %v365 = vadd.f32 %v246, %v364
    %366 = vmatprep.mubr.f32.mxu0 0.0
    %367 = vmatmul.mubr.f32.gmra.mrb[0].mxu0 %v270
    %v368 = vpop.f32.mrb[0].mxu0
    %v369 = vadd.f32 %v242, %v368
    %v370 = vpop.f32.mrb[0].mxu0
    %v371 = vadd.f32 %v246, %v370
    %372 = vmatprep.mubr.f32.mxu0 0.0
    %373 = vmatmul.mubr.f32.gmra.mrb[0].mxu0 %v273
    %v374 = vpop.f32.mrb[0].mxu0
    %v375 = vadd.f32 %v242, %v374
    %v376 = vpop.f32.mrb[0].mxu0
    %v377 = vadd.f32 %v246, %v376
    %378 = vmatprep.mubr.f32.mxu0 0.0
    %379 = vmatmul.mubr.f32.gmra.mrb[0].mxu0 %v276
    %v380 = vpop.f32.mrb[0].mxu0
    %v381 = vadd.f32 %v242, %v380
    %v382 = vpop.f32.mrb[0].mxu0
    %v383 = vadd.f32 %v246, %v382
    %384 = vmatprep.mubr.f32.mxu0 0.0
    %385 = vmatmul.mubr.f32.gmra.mrb[0].mxu0 %v279
    %v386 = vpop.f32.mrb[0].mxu0
    %v387 = vadd.f32 %v242, %v386
    %v388 = vpop.f32.mrb[0].mxu0
    %v389 = vadd.f32 %v246, %v388
    %390 = vmatprep.mubr.f32.mxu0 0.0
    %391 = vmatmul.mubr.f32.gmra.mrb[0].mxu0 %v282
    %v392 = vpop.f32.mrb[0].mxu0
    %v393 = vadd.f32 %v242, %v392
    %v394 = vpop.f32.mrb[0].mxu0
    %v395 = vadd.f32 %v246, %v394
    %396 = vdwg.mxu0
    %397 = vmatprep.subr.mxu0 %v232
    %398 = vmatpush1.msra.mxu0 %v231
    %399 = vmatprep.subr.mxu0 %v236
    %400 = vmatpush1.msra.mxu0 %v235
    %401 = vmatprep.subr.mxu0 0.0
    %402 = vmatpush1.msra.mxu0 0.0
    %403 = vmatprep.subr.mxu0 0.0
    %404 = vmatpush1.msra.mxu0 0.0
    %405 = vmatprep.subr.mxu0 0.0
    %406 = vmatpush1.msra.mxu0 0.0
    %407 = vmatprep.subr.mxu0 0.0
    %408 = vmatpush1.msra.mxu0 0.0
    %409 = vmatprep.subr.mxu0 0.0
    %410 = vmatpush1.msra.mxu0 0.0
    %411 = vmatprep.subr.mxu0 0.0
    %412 = vmatpush1.msra.mxu0 0.0
    %413 = vmatprep.subr.mxu0 0.0
    %414 = vmatpush1.msra.mxu0 0.0
    %415 = vmatprep.subr.mxu0 0.0
    %416 = vmatpush1.msra.mxu0 0.0
    %417 = vmatprep.subr.mxu0 0.0
    %418 = vmatpush1.msra.mxu0 0.0
    %419 = vmatprep.subr.mxu0 0.0
    %420 = vmatpush1.msra.mxu0 0.0
    %421 = vmatprep.subr.mxu0 0.0
    %422 = vmatpush1.msra.mxu0 0.0
    %423 = vmatprep.subr.mxu0 0.0
    %424 = vmatpush1.msra.mxu0 0.0
    %425 = vmatprep.subr.mxu0 0.0
    %426 = vmatpush1.msra.mxu0 0.0
    %427 = vmatprep.subr.mxu0 0.0
    %428 = vmatpush1.msra.mxu0 0.0
    %429 = vmatprep.subr.mxu0 0.0
    %430 = vmatpush1.msra.mxu0 0.0
    %431 = vmatprep.subr.mxu0 0.0
    %432 = vmatpush1.msra.mxu0 0.0
    %433 = vmatprep.subr.mxu0 0.0
    %434 = vmatpush1.msra.mxu0 0.0
    %435 = vmatprep.subr.mxu0 0.0
    %436 = vmatpush1.msra.mxu0 0.0
    %437 = vmatprep.subr.mxu0 0.0
    %438 = vmatpush1.msra.mxu0 0.0
    %439 = vmatprep.subr.mxu0 0.0
    %440 = vmatpush1.msra.mxu0 0.0
    %441 = vmatprep.subr.mxu0 0.0
    %442 = vmatpush1.msra.mxu0 0.0
    %443 = vmatprep.subr.mxu0 0.0
    %444 = vmatpush1.msra.mxu0 0.0
    %445 = vmatprep.subr.mxu0 0.0
    %446 = vmatpush1.msra.mxu0 0.0
    %447 = vmatprep.subr.mxu0 0.0
    %448 = vmatpush1.msra.mxu0 0.0
    %449 = vmatprep.subr.mxu0 0.0
    %450 = vmatpush1.msra.mxu0 0.0
    %451 = vmatprep.subr.mxu0 0.0
    %452 = vmatpush1.msra.mxu0 0.0
    %453 = vmatprep.subr.mxu0 0.0
    %454 = vmatpush1.msra.mxu0 0.0
    %455 = vmatprep.subr.mxu0 0.0
    %456 = vmatpush1.msra.mxu0 0.0
    %457 = vmatprep.subr.mxu0 0.0
    %458 = vmatpush1.msra.mxu0 0.0
    %459 = vmatprep.subr.mxu0 0.0
    %460 = vmatpush1.msra.mxu0 0.0
    %461 = vmatprep.mubr.f32.mxu0 0.0
    %462 = vmatmul.mubr.f32.gmra.mrb[0].mxu0 %v261
    %v463 = vpop.f32.mrb[0].mxu0
    %v464 = vadd.f32 %v250, %v463
    %v465 = vpop.f32.mrb[0].mxu0
    %v466 = vadd.f32 %v254, %v465
    %467 = vmatprep.mubr.f32.mxu0 0.0
    %468 = vmatmul.mubr.f32.gmra.mrb[0].mxu0 %v264
    %v469 = vpop.f32.mrb[0].mxu0
    %v470 = vadd.f32 %v250, %v469
    %v471 = vpop.f32.mrb[0].mxu0
    %v472 = vadd.f32 %v254, %v471
    %473 = vmatprep.mubr.f32.mxu0 0.0
    %474 = vmatmul.mubr.f32.gmra.mrb[0].mxu0 %v267
    %v475 = vpop.f32.mrb[0].mxu0
    %v476 = vadd.f32 %v250, %v475
    %v477 = vpop.f32.mrb[0].mxu0
    %v478 = vadd.f32 %v254, %v477
    %479 = vmatprep.mubr.f32.mxu0 0.0
    %480 = vmatmul.mubr.f32.gmra.mrb[0].mxu0 %v270
    %v481 = vpop.f32.mrb[0].mxu0
    %v482 = vadd.f32 %v250, %v481
    %v483 = vpop.f32.mrb[0].mxu0
    %v484 = vadd.f32 %v254, %v483
    %485 = vmatprep.mubr.f32.mxu0 0.0
    %486 = vmatmul.mubr.f32.gmra.mrb[0].mxu0 %v273
    %v487 = vpop.f32.mrb[0].mxu0
    %v488 = vadd.f32 %v250, %v487
    %v489 = vpop.f32.mrb[0].mxu0
    %v490 = vadd.f32 %v254, %v489
    %491 = vmatprep.mubr.f32.mxu0 0.0
    %492 = vmatmul.mubr.f32.gmra.mrb[0].mxu0 %v276
    %v493 = vpop.f32.mrb[0].mxu0
    %v494 = vadd.f32 %v250, %v493
    %v495 = vpop.f32.mrb[0].mxu0
    %v496 = vadd.f32 %v254, %v495
    %497 = vmatprep.mubr.f32.mxu0 0.0
    %498 = vmatmul.mubr.f32.gmra.mrb[0].mxu0 %v279
    %v499 = vpop.f32.mrb[0].mxu0
    %v500 = vadd.f32 %v250, %v499
    %v501 = vpop.f32.mrb[0].mxu0
    %v502 = vadd.f32 %v254, %v501
    %503 = vmatprep.mubr.f32.mxu0 0.0
    %504 = vmatmul.mubr.f32.gmra.mrb[0].mxu0 %v282
    %v505 = vpop.f32.mrb[0].mxu0
    %v506 = vadd.f32 %v250, %v505
    %v507 = vpop.f32.mrb[0].mxu0
    %v508 = vadd.f32 %v254, %v507
    %509 = vdwg.mxu0
    %510 = vst [vmem:[#allocation4] sm:$0xff] %v351
    %511 = vst [vmem:[#allocation4 + $0x8] sm:$0xff] %v353
    %512 = vst [vmem:[#allocation4 + $0x10] sm:$0xff] %v464
    %513 = vst [vmem:[#allocation4 + $0x18] sm:$0xff] %v466
    %514 = vst [vmem:[#allocation4 + $0x20] sm:$0xff] %v357
    %515 = vst [vmem:[#allocation4 + $0x28] sm:$0xff] %v359
    %516 = vst [vmem:[#allocation4 + $0x30] sm:$0xff] %v470
    %517 = vst [vmem:[#allocation4 + $0x38] sm:$0xff] %v472
    %518 = vst [vmem:[#allocation4 + $0x40] sm:$0xff] %v363
    %519 = vst [vmem:[#allocation4 + $0x48] sm:$0xff] %v365
    %520 = vst [vmem:[#allocation4 + $0x50] sm:$0xff] %v476
    %521 = vst [vmem:[#allocation4 + $0x58] sm:$0xff] %v478
    %522 = vst [vmem:[#allocation4 + $0x60] sm:$0xff] %v369
    %523 = vst [vmem:[#allocation4 + $0x68] sm:$0xff] %v371
    %524 = vst [vmem:[#allocation4 + $0x70] sm:$0xff] %v482
    %525 = vst [vmem:[#allocation4 + $0x78] sm:$0xff] %v484
    %526 = vst [vmem:[#allocation4 + $0x80] sm:$0xff] %v375
    %527 = vst [vmem:[#allocation4 + $0x88] sm:$0xff] %v377
    %528 = vst [vmem:[#allocation4 + $0x90] sm:$0xff] %v488
    %529 = vst [vmem:[#allocation4 + $0x98] sm:$0xff] %v490
    %530 = vst [vmem:[#allocation4 + $0xa0] sm:$0xff] %v381
    %531 = vst [vmem:[#allocation4 + $0xa8] sm:$0xff] %v383
    %532 = vst [vmem:[#allocation4 + $0xb0] sm:$0xff] %v494
    %533 = vst [vmem:[#allocation4 + $0xb8] sm:$0xff] %v496
    %534 = vst [vmem:[#allocation4 + $0xc0] sm:$0xff] %v387
    %535 = vst [vmem:[#allocation4 + $0xc8] sm:$0xff] %v389
    %536 = vst [vmem:[#allocation4 + $0xd0] sm:$0xff] %v500
    %537 = vst [vmem:[#allocation4 + $0xd8] sm:$0xff] %v502
    %538 = vst [vmem:[#allocation4 + $0xe0] sm:$0xff] %v393
    %539 = vst [vmem:[#allocation4 + $0xe8] sm:$0xff] %v395
    %540 = vst [vmem:[#allocation4 + $0xf0] sm:$0xff] %v506
    %541 = vst [vmem:[#allocation4 + $0xf8] sm:$0xff] %v508
    %v542 = vld [vmem:[#allocation2] sm:$0xff]
    %v543 = vld [vmem:[#allocation3] sm:$0xff]
    %v544 = vld [vmem:[#allocation4] sm:$0xff]
    %v545 = vld [vmem:[#allocation4 + $0x8] sm:$0xff]
    %v546 = vld [vmem:[#allocation4 + $0x10] sm:$0xff]
    %v547 = vld [vmem:[#allocation4 + $0x18] sm:$0xff]
    %v548 = vld [vmem:[#allocation10] sm:$0xff]
    %v549 = vld [vmem:[#allocation10 + $0x8] sm:$0xff]
    %v550 = vld [vmem:[#allocation10 + $0x10] sm:$0xff]
    %v551 = vld [vmem:[#allocation10 + $0x18] sm:$0xff]
    %v552 = vld [vmem:[#allocation10 + $0x20] sm:$0xff]
    %v553 = vld [vmem:[#allocation10 + $0x28] sm:$0xff]
    %v554 = vld [vmem:[#allocation10 + $0x30] sm:$0xff]
    %v555 = vld [vmem:[#allocation10 + $0x38] sm:$0xff]
    %v556 = vld [vmem:[#allocation10 + $0x40] sm:$0xff]
    %v557 = vld [vmem:[#allocation10 + $0x48] sm:$0xff]
    %v558 = vld [vmem:[#allocation10 + $0x50] sm:$0xff]
    %v559 = vld [vmem:[#allocation10 + $0x58] sm:$0xff]
    %v560 = vld [vmem:[#allocation10 + $0x60] sm:$0xff]
    %v561 = vld [vmem:[#allocation10 + $0x68] sm:$0xff]
    %v562 = vld [vmem:[#allocation10 + $0x70] sm:$0xff]
    %v563 = vld [vmem:[#allocation10 + $0x78] sm:$0xff]
    %v564 = vld [vmem:[#allocation10 + $0x80] sm:$0xff]
    %v565 = vld [vmem:[#allocation10 + $0x88] sm:$0xff]
    %v566 = vld [vmem:[#allocation10 + $0x90] sm:$0xff]
    %v567 = vld [vmem:[#allocation10 + $0x98] sm:$0xff]
    %v568 = vld [vmem:[#allocation10 + $0xa0] sm:$0xff]
    %v569 = vld [vmem:[#allocation10 + $0xa8] sm:$0xff]
    %v570 = vld [vmem:[#allocation10 + $0xb0] sm:$0xff]
    %v571 = vld [vmem:[#allocation10 + $0xb8] sm:$0xff]
    %v572 = vld [vmem:[#allocation10 + $0xc0] sm:$0xff]
    %v573 = vld [vmem:[#allocation10 + $0xc8] sm:$0xff]
    %v574 = vld [vmem:[#allocation10 + $0xd0] sm:$0xff]
    %v575 = vld [vmem:[#allocation10 + $0xd8] sm:$0xff]
    %v576 = vld [vmem:[#allocation10 + $0xe0] sm:$0xff]
    %v577 = vld [vmem:[#allocation10 + $0xe8] sm:$0xff]
    %v578 = vld [vmem:[#allocation10 + $0xf0] sm:$0xff]
    %v579 = vld [vmem:[#allocation10 + $0xf8] sm:$0xff]
    %v580 = vld [vmem:[#allocation10 + $0x100] sm:$0xff]
    %v581 = vld [vmem:[#allocation10 + $0x108] sm:$0xff]
    %v582 = vld [vmem:[#allocation10 + $0x110] sm:$0xff]
    %v583 = vld [vmem:[#allocation10 + $0x118] sm:$0xff]
    %v584 = vld [vmem:[#allocation10 + $0x120] sm:$0xff]
    %v585 = vld [vmem:[#allocation10 + $0x128] sm:$0xff]
    %v586 = vld [vmem:[#allocation10 + $0x130] sm:$0xff]
    %v587 = vld [vmem:[#allocation10 + $0x138] sm:$0xff]
    %v588 = vld [vmem:[#allocation10 + $0x140] sm:$0xff]
    %v589 = vld [vmem:[#allocation10 + $0x148] sm:$0xff]
    %v590 = vld [vmem:[#allocation10 + $0x150] sm:$0xff]
    %v591 = vld [vmem:[#allocation10 + $0x158] sm:$0xff]
    %v592 = vld [vmem:[#allocation10 + $0x160] sm:$0xff]
    %v593 = vld [vmem:[#allocation10 + $0x168] sm:$0xff]
    %v594 = vld [vmem:[#allocation10 + $0x170] sm:$0xff]
    %v595 = vld [vmem:[#allocation10 + $0x178] sm:$0xff]
    %v596 = vld [vmem:[#allocation10 + $0x180] sm:$0xff]
    %v597 = vld [vmem:[#allocation10 + $0x188] sm:$0xff]
    %v598 = vld [vmem:[#allocation10 + $0x190] sm:$0xff]
    %v599 = vld [vmem:[#allocation10 + $0x198] sm:$0xff]
    %v600 = vld [vmem:[#allocation10 + $0x1a0] sm:$0xff]
    %v601 = vld [vmem:[#allocation10 + $0x1a8] sm:$0xff]
    %v602 = vld [vmem:[#allocation10 + $0x1b0] sm:$0xff]
    %v603 = vld [vmem:[#allocation10 + $0x1b8] sm:$0xff]
    %v604 = vld [vmem:[#allocation10 + $0x1c0] sm:$0xff]
    %v605 = vld [vmem:[#allocation10 + $0x1c8] sm:$0xff]
    %v606 = vld [vmem:[#allocation10 + $0x1d0] sm:$0xff]
    %v607 = vld [vmem:[#allocation10 + $0x1d8] sm:$0xff]
    %v608 = vld [vmem:[#allocation10 + $0x1e0] sm:$0xff]
    %v609 = vld [vmem:[#allocation10 + $0x1e8] sm:$0xff]
    %v610 = vld [vmem:[#allocation10 + $0x1f0] sm:$0xff]
    %v611 = vld [vmem:[#allocation10 + $0x1f8] sm:$0xff]
    %612 = vmatprep.subr.mxu0 %v549
    %613 = vmatpush1.msra.mxu0 %v548
    %614 = vmatprep.subr.mxu0 %v553
    %615 = vmatpush1.msra.mxu0 %v552
    %616 = vmatprep.subr.mxu0 %v557
    %617 = vmatpush1.msra.mxu0 %v556
    %618 = vmatprep.subr.mxu0 %v561
    %619 = vmatpush1.msra.mxu0 %v560
    %620 = vmatprep.subr.mxu0 %v565
    %621 = vmatpush1.msra.mxu0 %v564
    %622 = vmatprep.subr.mxu0 %v569
    %623 = vmatpush1.msra.mxu0 %v568
    %624 = vmatprep.subr.mxu0 %v573
    %625 = vmatpush1.msra.mxu0 %v572
    %626 = vmatprep.subr.mxu0 %v577
    %627 = vmatpush1.msra.mxu0 %v576
    %628 = vmatprep.subr.mxu0 %v581
    %629 = vmatpush1.msra.mxu0 %v580
    %630 = vmatprep.subr.mxu0 %v585
    %631 = vmatpush1.msra.mxu0 %v584
    %632 = vmatprep.subr.mxu0 %v589
    %633 = vmatpush1.msra.mxu0 %v588
    %634 = vmatprep.subr.mxu0 %v593
    %635 = vmatpush1.msra.mxu0 %v592
    %636 = vmatprep.subr.mxu0 %v597
    %637 = vmatpush1.msra.mxu0 %v596
    %638 = vmatprep.subr.mxu0 %v601
    %639 = vmatpush1.msra.mxu0 %v600
    %640 = vmatprep.subr.mxu0 %v605
    %641 = vmatpush1.msra.mxu0 %v604
    %642 = vmatprep.subr.mxu0 %v609
    %643 = vmatpush1.msra.mxu0 %v608
    %644 = vmatprep.subr.mxu0 0.0
    %645 = vmatpush1.msra.mxu0 0.0
    %646 = vmatprep.subr.mxu0 0.0
    %647 = vmatpush1.msra.mxu0 0.0
    %648 = vmatprep.subr.mxu0 0.0
    %649 = vmatpush1.msra.mxu0 0.0
    %650 = vmatprep.subr.mxu0 0.0
    %651 = vmatpush1.msra.mxu0 0.0
    %652 = vmatprep.subr.mxu0 0.0
    %653 = vmatpush1.msra.mxu0 0.0
    %654 = vmatprep.subr.mxu0 0.0
    %655 = vmatpush1.msra.mxu0 0.0
    %656 = vmatprep.subr.mxu0 0.0
    %657 = vmatpush1.msra.mxu0 0.0
    %658 = vmatprep.subr.mxu0 0.0
    %659 = vmatpush1.msra.mxu0 0.0
    %660 = vmatprep.subr.mxu0 0.0
    %661 = vmatpush1.msra.mxu0 0.0
    %662 = vmatprep.subr.mxu0 0.0
    %663 = vmatpush1.msra.mxu0 0.0
    %664 = vmatprep.subr.mxu0 0.0
    %665 = vmatpush1.msra.mxu0 0.0
    %666 = vmatprep.subr.mxu0 0.0
    %667 = vmatpush1.msra.mxu0 0.0
    %668 = vmatprep.subr.mxu0 0.0
    %669 = vmatpush1.msra.mxu0 0.0
    %670 = vmatprep.subr.mxu0 0.0
    %671 = vmatpush1.msra.mxu0 0.0
    %672 = vmatprep.subr.mxu0 0.0
    %673 = vmatpush1.msra.mxu0 0.0
    %674 = vmatprep.subr.mxu0 0.0
    %675 = vmatpush1.msra.mxu0 0.0
    %676 = vmatprep.mubr.f32.mxu0 0.0
    %677 = vmatmul.mubr.f32.gmra.mrb[0].mxu0 %v542
    %v678 = vpop.f32.mrb[0].mxu0
    %v679 = vadd.f32 0.0, %v678
    %v680 = vpop.f32.mrb[0].mxu0
    %v681 = vadd.f32 0.0, %v680
    %682 = vdwg.mxu0
    %683 = vmatprep.subr.mxu0 %v551
    %684 = vmatpush1.msra.mxu0 %v550
    %685 = vmatprep.subr.mxu0 %v555
    %686 = vmatpush1.msra.mxu0 %v554
    %687 = vmatprep.subr.mxu0 %v559
    %688 = vmatpush1.msra.mxu0 %v558
    %689 = vmatprep.subr.mxu0 %v563
    %690 = vmatpush1.msra.mxu0 %v562
    %691 = vmatprep.subr.mxu0 %v567
    %692 = vmatpush1.msra.mxu0 %v566
    %693 = vmatprep.subr.mxu0 %v571
    %694 = vmatpush1.msra.mxu0 %v570
    %695 = vmatprep.subr.mxu0 %v575
    %696 = vmatpush1.msra.mxu0 %v574
    %697 = vmatprep.subr.mxu0 %v579
    %698 = vmatpush1.msra.mxu0 %v578
    %699 = vmatprep.subr.mxu0 %v583
    %700 = vmatpush1.msra.mxu0 %v582
    %701 = vmatprep.subr.mxu0 %v587
    %702 = vmatpush1.msra.mxu0 %v586
    %703 = vmatprep.subr.mxu0 %v591
    %704 = vmatpush1.msra.mxu0 %v590
    %705 = vmatprep.subr.mxu0 %v595
    %706 = vmatpush1.msra.mxu0 %v594
    %707 = vmatprep.subr.mxu0 %v599
    %708 = vmatpush1.msra.mxu0 %v598
    %709 = vmatprep.subr.mxu0 %v603
    %710 = vmatpush1.msra.mxu0 %v602
    %711 = vmatprep.subr.mxu0 %v607
    %712 = vmatpush1.msra.mxu0 %v606
    %713 = vmatprep.subr.mxu0 %v611
    %714 = vmatpush1.msra.mxu0 %v610
    %715 = vmatprep.subr.mxu0 0.0
    %716 = vmatpush1.msra.mxu0 0.0
    %717 = vmatprep.subr.mxu0 0.0
    %718 = vmatpush1.msra.mxu0 0.0
    %719 = vmatprep.subr.mxu0 0.0
    %720 = vmatpush1.msra.mxu0 0.0
    %721 = vmatprep.subr.mxu0 0.0
    %722 = vmatpush1.msra.mxu0 0.0
    %723 = vmatprep.subr.mxu0 0.0
    %724 = vmatpush1.msra.mxu0 0.0
    %725 = vmatprep.subr.mxu0 0.0
    %726 = vmatpush1.msra.mxu0 0.0
    %727 = vmatprep.subr.mxu0 0.0
    %728 = vmatpush1.msra.mxu0 0.0
    %729 = vmatprep.subr.mxu0 0.0
    %730 = vmatpush1.msra.mxu0 0.0
    %731 = vmatprep.subr.mxu0 0.0
    %732 = vmatpush1.msra.mxu0 0.0
    %733 = vmatprep.subr.mxu0 0.0
    %734 = vmatpush1.msra.mxu0 0.0
    %735 = vmatprep.subr.mxu0 0.0
    %736 = vmatpush1.msra.mxu0 0.0
    %737 = vmatprep.subr.mxu0 0.0
    %738 = vmatpush1.msra.mxu0 0.0
    %739 = vmatprep.subr.mxu0 0.0
    %740 = vmatpush1.msra.mxu0 0.0
    %741 = vmatprep.subr.mxu0 0.0
    %742 = vmatpush1.msra.mxu0 0.0
    %743 = vmatprep.subr.mxu0 0.0
    %744 = vmatpush1.msra.mxu0 0.0
    %745 = vmatprep.subr.mxu0 0.0
    %746 = vmatpush1.msra.mxu0 0.0
    %747 = vmatprep.mubr.f32.mxu0 0.0
    %748 = vmatmul.mubr.f32.gmra.mrb[0].mxu0 %v542
    %v749 = vpop.f32.mrb[0].mxu0
    %v750 = vadd.f32 0.0, %v749
    %v751 = vpop.f32.mrb[0].mxu0
    %v752 = vadd.f32 0.0, %v751
    %753 = vdwg.mxu0
    %v754 = vadd.f32 %v544, %v679
    %v755 = vadd.f32 %v545, %v681
    %v756 = vadd.f32 %v546, %v750
    %v757 = vadd.f32 %v547, %v752
    %v758 = vxor.u32 %v754, 2147483648
    %v759 = vmul.f32 %v758, 1.442695
    %v760 = vpow.pop %v759
    %v761 = vadd.f32 %v760, 1.0
    %v762 = vrcp.pop %v761
    %v763 = vmul.f32 1.0, %v762
    %v764 = vxor.u32 %v755, 2147483648
    %v765 = vmul.f32 %v764, 1.442695
    %v766 = vpow.pop %v765
    %v767 = vadd.f32 %v766, 1.0
    %v768 = vrcp.pop %v767
    %v769 = vmul.f32 1.0, %v768
    %v770 = vtanh.pop %v756
    %v771 = vxor.u32 %v757, 2147483648
    %v772 = vmul.f32 %v771, 1.442695
    %v773 = vpow.pop %v772
    %v774 = vadd.f32 %v773, 1.0
    %v775 = vrcp.pop %v774
    %v776 = vmul.f32 1.0, %v775
    %v777 = vmul.f32 %v769, %v543
    %v778 = vmul.f32 %v763, %v770
    %v779 = vadd.f32 %v777, %v778
    %v780 = vtanh.pop %v779
    %v781 = vmul.f32 %v776, %v780
    %s782 = scalar_lea.vmem [#allocation4], 32
    %v783 = vld [vmem:[%s782] sm:$0xff]
    %v784 = vld [vmem:[%s782 + $0x8] sm:$0xff]
    %v785 = vld [vmem:[%s782 + $0x10] sm:$0xff]
    %v786 = vld [vmem:[%s782 + $0x18] sm:$0xff]
    %787 = vmatprep.subr.mxu0 %v549
    %788 = vmatpush1.msra.mxu0 %v548
    %789 = vmatprep.subr.mxu0 %v553
    %790 = vmatpush1.msra.mxu0 %v552
    %791 = vmatprep.subr.mxu0 %v557
    %792 = vmatpush1.msra.mxu0 %v556
    %793 = vmatprep.subr.mxu0 %v561
    %794 = vmatpush1.msra.mxu0 %v560
    %795 = vmatprep.subr.mxu0 %v565
    %796 = vmatpush1.msra.mxu0 %v564
    %797 = vmatprep.subr.mxu0 %v569
    %798 = vmatpush1.msra.mxu0 %v568
    %799 = vmatprep.subr.mxu0 %v573
    %800 = vmatpush1.msra.mxu0 %v572
    %801 = vmatprep.subr.mxu0 %v577
    %802 = vmatpush1.msra.mxu0 %v576
    %803 = vmatprep.subr.mxu0 %v581
    %804 = vmatpush1.msra.mxu0 %v580
    %805 = vmatprep.subr.mxu0 %v585
    %806 = vmatpush1.msra.mxu0 %v584
    %807 = vmatprep.subr.mxu0 %v589
    %808 = vmatpush1.msra.mxu0 %v588
    %809 = vmatprep.subr.mxu0 %v593
    %810 = vmatpush1.msra.mxu0 %v592
    %811 = vmatprep.subr.mxu0 %v597
    %812 = vmatpush1.msra.mxu0 %v596
    %813 = vmatprep.subr.mxu0 %v601
    %814 = vmatpush1.msra.mxu0 %v600
    %815 = vmatprep.subr.mxu0 %v605
    %816 = vmatpush1.msra.mxu0 %v604
    %817 = vmatprep.subr.mxu0 %v609
    %818 = vmatpush1.msra.mxu0 %v608
    %819 = vmatprep.subr.mxu0 0.0
    %820 = vmatpush1.msra.mxu0 0.0
    %821 = vmatprep.subr.mxu0 0.0
    %822 = vmatpush1.msra.mxu0 0.0
    %823 = vmatprep.subr.mxu0 0.0
    %824 = vmatpush1.msra.mxu0 0.0
    %825 = vmatprep.subr.mxu0 0.0
    %826 = vmatpush1.msra.mxu0 0.0
    %827 = vmatprep.subr.mxu0 0.0
    %828 = vmatpush1.msra.mxu0 0.0
    %829 = vmatprep.subr.mxu0 0.0
    %830 = vmatpush1.msra.mxu0 0.0
    %831 = vmatprep.subr.mxu0 0.0
    %832 = vmatpush1.msra.mxu0 0.0
    %833 = vmatprep.subr.mxu0 0.0
    %834 = vmatpush1.msra.mxu0 0.0
    %835 = vmatprep.subr.mxu0 0.0
    %836 = vmatpush1.msra.mxu0 0.0
    %837 = vmatprep.subr.mxu0 0.0
    %838 = vmatpush1.msra.mxu0 0.0
    %839 = vmatprep.subr.mxu0 0.0
    %840 = vmatpush1.msra.mxu0 0.0
    %841 = vmatprep.subr.mxu0 0.0
    %842 = vmatpush1.msra.mxu0 0.0
    %843 = vmatprep.subr.mxu0 0.0
    %844 = vmatpush1.msra.mxu0 0.0
    %845 = vmatprep.subr.mxu0 0.0
    %846 = vmatpush1.msra.mxu0 0.0
    %847 = vmatprep.subr.mxu0 0.0
    %848 = vmatpush1.msra.mxu0 0.0
    %849 = vmatprep.subr.mxu0 0.0
    %850 = vmatpush1.msra.mxu0 0.0
    %851 = vmatprep.mubr.f32.mxu0 0.0
    %852 = vmatmul.mubr.f32.gmra.mrb[0].mxu0 %v781
    %v853 = vpop.f32.mrb[0].mxu0
    %v854 = vadd.f32 0.0, %v853
    %v855 = vpop.f32.mrb[0].mxu0
    %v856 = vadd.f32 0.0, %v855
    %857 = vdwg.mxu0
    %858 = vmatprep.subr.mxu0 %v551
    %859 = vmatpush1.msra.mxu0 %v550
    %860 = vmatprep.subr.mxu0 %v555
    %861 = vmatpush1.msra.mxu0 %v554
    %862 = vmatprep.subr.mxu0 %v559
    %863 = vmatpush1.msra.mxu0 %v558
    %864 = vmatprep.subr.mxu0 %v563
    %865 = vmatpush1.msra.mxu0 %v562
    %866 = vmatprep.subr.mxu0 %v567
    %867 = vmatpush1.msra.mxu0 %v566
    %868 = vmatprep.subr.mxu0 %v571
    %869 = vmatpush1.msra.mxu0 %v570
    %870 = vmatprep.subr.mxu0 %v575
    %871 = vmatpush1.msra.mxu0 %v574
    %872 = vmatprep.subr.mxu0 %v579
    %873 = vmatpush1.msra.mxu0 %v578
    %874 = vmatprep.subr.mxu0 %v583
    %875 = vmatpush1.msra.mxu0 %v582
    %876 = vmatprep.subr.mxu0 %v587
    %877 = vmatpush1.msra.mxu0 %v586
    %878 = vmatprep.subr.mxu0 %v591
    %879 = vmatpush1.msra.mxu0 %v590
    %880 = vmatprep.subr.mxu0 %v595
    %881 = vmatpush1.msra.mxu0 %v594
    %882 = vmatprep.subr.mxu0 %v599
    %883 = vmatpush1.msra.mxu0 %v598
    %884 = vmatprep.subr.mxu0 %v603
    %885 = vmatpush1.msra.mxu0 %v602
    %886 = vmatprep.subr.mxu0 %v607
    %887 = vmatpush1.msra.mxu0 %v606
    %888 = vmatprep.subr.mxu0 %v611
    %889 = vmatpush1.msra.mxu0 %v610
    %890 = vmatprep.subr.mxu0 0.0
    %891 = vmatpush1.msra.mxu0 0.0
    %892 = vmatprep.subr.mxu0 0.0
    %893 = vmatpush1.msra.mxu0 0.0
    %894 = vmatprep.subr.mxu0 0.0
    %895 = vmatpush1.msra.mxu0 0.0
    %896 = vmatprep.subr.mxu0 0.0
    %897 = vmatpush1.msra.mxu0 0.0
    %898 = vmatprep.subr.mxu0 0.0
    %899 = vmatpush1.msra.mxu0 0.0
    %900 = vmatprep.subr.mxu0 0.0
    %901 = vmatpush1.msra.mxu0 0.0
    %902 = vmatprep.subr.mxu0 0.0
    %903 = vmatpush1.msra.mxu0 0.0
    %904 = vmatprep.subr.mxu0 0.0
    %905 = vmatpush1.msra.mxu0 0.0
    %906 = vmatprep.subr.mxu0 0.0
    %907 = vmatpush1.msra.mxu0 0.0
    %908 = vmatprep.subr.mxu0 0.0
    %909 = vmatpush1.msra.mxu0 0.0
    %910 = vmatprep.subr.mxu0 0.0
    %911 = vmatpush1.msra.mxu0 0.0
    %912 = vmatprep.subr.mxu0 0.0
    %913 = vmatpush1.msra.mxu0 0.0
    %914 = vmatprep.subr.mxu0 0.0
    %915 = vmatpush1.msra.mxu0 0.0
    %916 = vmatprep.subr.mxu0 0.0
    %917 = vmatpush1.msra.mxu0 0.0
    %918 = vmatprep.subr.mxu0 0.0
    %919 = vmatpush1.msra.mxu0 0.0
    %920 = vmatprep.subr.mxu0 0.0
    %921 = vmatpush1.msra.mxu0 0.0
    %922 = vmatprep.mubr.f32.mxu0 0.0
    %923 = vmatmul.mubr.f32.gmra.mrb[0].mxu0 %v781
    %v924 = vpop.f32.mrb[0].mxu0
    %v925 = vadd.f32 0.0, %v924
    %v926 = vpop.f32.mrb[0].mxu0
    %v927 = vadd.f32 0.0, %v926
    %928 = vdwg.mxu0
    %v929 = vadd.f32 %v783, %v854
    %v930 = vadd.f32 %v784, %v856
    %v931 = vadd.f32 %v785, %v925
    %v932 = vadd.f32 %v786, %v927
    %v933 = vxor.u32 %v929, 2147483648
    %v934 = vmul.f32 %v933, 1.442695
    %v935 = vpow.pop %v934
    %v936 = vadd.f32 %v935, 1.0
    %v937 = vrcp.pop %v936
    %v938 = vmul.f32 1.0, %v937
    %v939 = vxor.u32 %v930, 2147483648
    %v940 = vmul.f32 %v939, 1.442695
    %v941 = vpow.pop %v940
    %v942 = vadd.f32 %v941, 1.0
    %v943 = vrcp.pop %v942
    %v944 = vmul.f32 1.0, %v943
    %v945 = vtanh.pop %v931
    %v946 = vxor.u32 %v932, 2147483648
    %v947 = vmul.f32 %v946, 1.442695
    %v948 = vpow.pop %v947
    %v949 = vadd.f32 %v948, 1.0
    %v950 = vrcp.pop %v949
    %v951 = vmul.f32 1.0, %v950
    %v952 = vmul.f32 %v944, %v779
    %v953 = vmul.f32 %v938, %v945
    %v954 = vadd.f32 %v952, %v953
    %v955 = vtanh.pop %v954
    %v956 = vmul.f32 %v951, %v955
    %s957 = scalar_lea.vmem [#allocation4], 64
    %v958 = vld [vmem:[%s957] sm:$0xff]
    %v959 = vld [vmem:[%s957 + $0x8] sm:$0xff]
    %v960 = vld [vmem:[%s957 + $0x10] sm:$0xff]
    %v961 = vld [vmem:[%s957 + $0x18] sm:$0xff]
    %962 = vmatprep.subr.mxu0 %v549
    %963 = vmatpush1.msra.mxu0 %v548
    %964 = vmatprep.subr.mxu0 %v553
    %965 = vmatpush1.msra.mxu0 %v552
    %966 = vmatprep.subr.mxu0 %v557
    %967 = vmatpush1.msra.mxu0 %v556
    %968 = vmatprep.subr.mxu0 %v561
    %969 = vmatpush1.msra.mxu0 %v560
    %970 = vmatprep.subr.mxu0 %v565
    %971 = vmatpush1.msra.mxu0 %v564
    %972 = vmatprep.subr.mxu0 %v569
    %973 = vmatpush1.msra.mxu0 %v568
    %974 = vmatprep.subr.mxu0 %v573
    %975 = vmatpush1.msra.mxu0 %v572
    %976 = vmatprep.subr.mxu0 %v577
    %977 = vmatpush1.msra.mxu0 %v576
    %978 = vmatprep.subr.mxu0 %v581
    %979 = vmatpush1.msra.mxu0 %v580
    %980 = vmatprep.subr.mxu0 %v585
    %981 = vmatpush1.msra.mxu0 %v584
    %982 = vmatprep.subr.mxu0 %v589
    %983 = vmatpush1.msra.mxu0 %v588
    %984 = vmatprep.subr.mxu0 %v593
    %985 = vmatpush1.msra.mxu0 %v592
    %986 = vmatprep.subr.mxu0 %v597
    %987 = vmatpush1.msra.mxu0 %v596
    %988 = vmatprep.subr.mxu0 %v601
    %989 = vmatpush1.msra.mxu0 %v600
    %990 = vmatprep.subr.mxu0 %v605
    %991 = vmatpush1.msra.mxu0 %v604
    %992 = vmatprep.subr.mxu0 %v609
    %993 = vmatpush1.msra.mxu0 %v608
    %994 = vmatprep.subr.mxu0 0.0
    %995 = vmatpush1.msra.mxu0 0.0
    %996 = vmatprep.subr.mxu0 0.0
    %997 = vmatpush1.msra.mxu0 0.0
    %998 = vmatprep.subr.mxu0 0.0
    %999 = vmatpush1.msra.mxu0 0.0
    %1000 = vmatprep.subr.mxu0 0.0
    %1001 = vmatpush1.msra.mxu0 0.0
    %1002 = vmatprep.subr.mxu0 0.0
    %1003 = vmatpush1.msra.mxu0 0.0
    %1004 = vmatprep.subr.mxu0 0.0
    %1005 = vmatpush1.msra.mxu0 0.0
    %1006 = vmatprep.subr.mxu0 0.0
    %1007 = vmatpush1.msra.mxu0 0.0
    %1008 = vmatprep.subr.mxu0 0.0
    %1009 = vmatpush1.msra.mxu0 0.0
    %1010 = vmatprep.subr.mxu0 0.0
    %1011 = vmatpush1.msra.mxu0 0.0
    %1012 = vmatprep.subr.mxu0 0.0
    %1013 = vmatpush1.msra.mxu0 0.0
    %1014 = vmatprep.subr.mxu0 0.0
    %1015 = vmatpush1.msra.mxu0 0.0
    %1016 = vmatprep.subr.mxu0 0.0
    %1017 = vmatpush1.msra.mxu0 0.0
    %1018 = vmatprep.subr.mxu0 0.0
    %1019 = vmatpush1.msra.mxu0 0.0
    %1020 = vmatprep.subr.mxu0 0.0
    %1021 = vmatpush1.msra.mxu0 0.0
    %1022 = vmatprep.subr.mxu0 0.0
    %1023 = vmatpush1.msra.mxu0 0.0
    %1024 = vmatprep.subr.mxu0 0.0
    %1025 = vmatpush1.msra.mxu0 0.0
    %1026 = vmatprep.mubr.f32.mxu0 0.0
    %1027 = vmatmul.mubr.f32.gmra.mrb[0].mxu0 %v956
    %v1028 = vpop.f32.mrb[0].mxu0
    %v1029 = vadd.f32 0.0, %v1028
    %v1030 = vpop.f32.mrb[0].mxu0
    %v1031 = vadd.f32 0.0, %v1030
    %1032 = vdwg.mxu0
    %1033 = vmatprep.subr.mxu0 %v551
    %1034 = vmatpush1.msra.mxu0 %v550
    %1035 = vmatprep.subr.mxu0 %v555
    %1036 = vmatpush1.msra.mxu0 %v554
    %1037 = vmatprep.subr.mxu0 %v559
    %1038 = vmatpush1.msra.mxu0 %v558
    %1039 = vmatprep.subr.mxu0 %v563
    %1040 = vmatpush1.msra.mxu0 %v562
    %1041 = vmatprep.subr.mxu0 %v567
    %1042 = vmatpush1.msra.mxu0 %v566
    %1043 = vmatprep.subr.mxu0 %v571
    %1044 = vmatpush1.msra.mxu0 %v570
    %1045 = vmatprep.subr.mxu0 %v575
    %1046 = vmatpush1.msra.mxu0 %v574
    %1047 = vmatprep.subr.mxu0 %v579
    %1048 = vmatpush1.msra.mxu0 %v578
    %1049 = vmatprep.subr.mxu0 %v583
    %1050 = vmatpush1.msra.mxu0 %v582
    %1051 = vmatprep.subr.mxu0 %v587
    %1052 = vmatpush1.msra.mxu0 %v586
    %1053 = vmatprep.subr.mxu0 %v591
    %1054 = vmatpush1.msra.mxu0 %v590
    %1055 = vmatprep.subr.mxu0 %v595
    %1056 = vmatpush1.msra.mxu0 %v594
    %1057 = vmatprep.subr.mxu0 %v599
    %1058 = vmatpush1.msra.mxu0 %v598
    %1059 = vmatprep.subr.mxu0 %v603
    %1060 = vmatpush1.msra.mxu0 %v602
    %1061 = vmatprep.subr.mxu0 %v607
    %1062 = vmatpush1.msra.mxu0 %v606
    %1063 = vmatprep.subr.mxu0 %v611
    %1064 = vmatpush1.msra.mxu0 %v610
    %1065 = vmatprep.subr.mxu0 0.0
    %1066 = vmatpush1.msra.mxu0 0.0
    %1067 = vmatprep.subr.mxu0 0.0
    %1068 = vmatpush1.msra.mxu0 0.0
    %1069 = vmatprep.subr.mxu0 0.0
    %1070 = vmatpush1.msra.mxu0 0.0
    %1071 = vmatprep.subr.mxu0 0.0
    %1072 = vmatpush1.msra.mxu0 0.0
    %1073 = vmatprep.subr.mxu0 0.0
    %1074 = vmatpush1.msra.mxu0 0.0
    %1075 = vmatprep.subr.mxu0 0.0
    %1076 = vmatpush1.msra.mxu0 0.0
    %1077 = vmatprep.subr.mxu0 0.0
    %1078 = vmatpush1.msra.mxu0 0.0
    %1079 = vmatprep.subr.mxu0 0.0
    %1080 = vmatpush1.msra.mxu0 0.0
    %1081 = vmatprep.subr.mxu0 0.0
    %1082 = vmatpush1.msra.mxu0 0.0
    %1083 = vmatprep.subr.mxu0 0.0
    %1084 = vmatpush1.msra.mxu0 0.0
    %1085 = vmatprep.subr.mxu0 0.0
    %1086 = vmatpush1.msra.mxu0 0.0
    %1087 = vmatprep.subr.mxu0 0.0
    %1088 = vmatpush1.msra.mxu0 0.0
    %1089 = vmatprep.subr.mxu0 0.0
    %1090 = vmatpush1.msra.mxu0 0.0
    %1091 = vmatprep.subr.mxu0 0.0
    %1092 = vmatpush1.msra.mxu0 0.0
    %1093 = vmatprep.subr.mxu0 0.0
    %1094 = vmatpush1.msra.mxu0 0.0
    %1095 = vmatprep.subr.mxu0 0.0
    %1096 = vmatpush1.msra.mxu0 0.0
    %1097 = vmatprep.mubr.f32.mxu0 0.0
    %1098 = vmatmul.mubr.f32.gmra.mrb[0].mxu0 %v956
    %v1099 = vpop.f32.mrb[0].mxu0
    %v1100 = vadd.f32 0.0, %v1099
    %v1101 = vpop.f32.mrb[0].mxu0
    %v1102 = vadd.f32 0.0, %v1101
    %1103 = vdwg.mxu0
    %v1104 = vadd.f32 %v958, %v1029
    %v1105 = vadd.f32 %v959, %v1031
    %v1106 = vadd.f32 %v960, %v1100
    %v1107 = vadd.f32 %v961, %v1102
    %v1108 = vxor.u32 %v1104, 2147483648
    %v1109 = vmul.f32 %v1108, 1.442695
    %v1110 = vpow.pop %v1109
    %v1111 = vadd.f32 %v1110, 1.0
    %v1112 = vrcp.pop %v1111
    %v1113 = vmul.f32 1.0, %v1112
    %v1114 = vxor.u32 %v1105, 2147483648
    %v1115 = vmul.f32 %v1114, 1.442695
    %v1116 = vpow.pop %v1115
    %v1117 = vadd.f32 %v1116, 1.0
    %v1118 = vrcp.pop %v1117
    %v1119 = vmul.f32 1.0, %v1118
    %v1120 = vtanh.pop %v1106
    %v1121 = vxor.u32 %v1107, 2147483648
    %v1122 = vmul.f32 %v1121, 1.442695
    %v1123 = vpow.pop %v1122
    %v1124 = vadd.f32 %v1123, 1.0
    %v1125 = vrcp.pop %v1124
    %v1126 = vmul.f32 1.0, %v1125
    %v1127 = vmul.f32 %v1119, %v954
    %v1128 = vmul.f32 %v1113, %v1120
    %v1129 = vadd.f32 %v1127, %v1128
    %v1130 = vtanh.pop %v1129
    %v1131 = vmul.f32 %v1126, %v1130
    %s1132 = scalar_lea.vmem [#allocation4], 96
    %v1133 = vld [vmem:[%s1132] sm:$0xff]
    %v1134 = vld [vmem:[%s1132 + $0x8] sm:$0xff]
    %v1135 = vld [vmem:[%s1132 + $0x10] sm:$0xff]
    %v1136 = vld [vmem:[%s1132 + $0x18] sm:$0xff]
    %1137 = vmatprep.subr.mxu0 %v549
    %1138 = vmatpush1.msra.mxu0 %v548
    %1139 = vmatprep.subr.mxu0 %v553
    %1140 = vmatpush1.msra.mxu0 %v552
    %1141 = vmatprep.subr.mxu0 %v557
    %1142 = vmatpush1.msra.mxu0 %v556
    %1143 = vmatprep.subr.mxu0 %v561
    %1144 = vmatpush1.msra.mxu0 %v560
    %1145 = vmatprep.subr.mxu0 %v565
    %1146 = vmatpush1.msra.mxu0 %v564
    %1147 = vmatprep.subr.mxu0 %v569
    %1148 = vmatpush1.msra.mxu0 %v568
    %1149 = vmatprep.subr.mxu0 %v573
    %1150 = vmatpush1.msra.mxu0 %v572
    %1151 = vmatprep.subr.mxu0 %v577
    %1152 = vmatpush1.msra.mxu0 %v576
    %1153 = vmatprep.subr.mxu0 %v581
    %1154 = vmatpush1.msra.mxu0 %v580
    %1155 = vmatprep.subr.mxu0 %v585
    %1156 = vmatpush1.msra.mxu0 %v584
    %1157 = vmatprep.subr.mxu0 %v589
    %1158 = vmatpush1.msra.mxu0 %v588
    %1159 = vmatprep.subr.mxu0 %v593
    %1160 = vmatpush1.msra.mxu0 %v592
    %1161 = vmatprep.subr.mxu0 %v597
    %1162 = vmatpush1.msra.mxu0 %v596
    %1163 = vmatprep.subr.mxu0 %v601
    %1164 = vmatpush1.msra.mxu0 %v600
    %1165 = vmatprep.subr.mxu0 %v605
    %1166 = vmatpush1.msra.mxu0 %v604
    %1167 = vmatprep.subr.mxu0 %v609
    %1168 = vmatpush1.msra.mxu0 %v608
    %1169 = vmatprep.subr.mxu0 0.0
    %1170 = vmatpush1.msra.mxu0 0.0
    %1171 = vmatprep.subr.mxu0 0.0
    %1172 = vmatpush1.msra.mxu0 0.0
    %1173 = vmatprep.subr.mxu0 0.0
    %1174 = vmatpush1.msra.mxu0 0.0
    %1175 = vmatprep.subr.mxu0 0.0
    %1176 = vmatpush1.msra.mxu0 0.0
    %1177 = vmatprep.subr.mxu0 0.0
    %1178 = vmatpush1.msra.mxu0 0.0
    %1179 = vmatprep.subr.mxu0 0.0
    %1180 = vmatpush1.msra.mxu0 0.0
    %1181 = vmatprep.subr.mxu0 0.0
    %1182 = vmatpush1.msra.mxu0 0.0
    %1183 = vmatprep.subr.mxu0 0.0
    %1184 = vmatpush1.msra.mxu0 0.0
    %1185 = vmatprep.subr.mxu0 0.0
    %1186 = vmatpush1.msra.mxu0 0.0
    %1187 = vmatprep.subr.mxu0 0.0
    %1188 = vmatpush1.msra.mxu0 0.0
    %1189 = vmatprep.subr.mxu0 0.0
    %1190 = vmatpush1.msra.mxu0 0.0
    %1191 = vmatprep.subr.mxu0 0.0
    %1192 = vmatpush1.msra.mxu0 0.0
    %1193 = vmatprep.subr.mxu0 0.0
    %1194 = vmatpush1.msra.mxu0 0.0
    %1195 = vmatprep.subr.mxu0 0.0
    %1196 = vmatpush1.msra.mxu0 0.0
    %1197 = vmatprep.subr.mxu0 0.0
    %1198 = vmatpush1.msra.mxu0 0.0
    %1199 = vmatprep.subr.mxu0 0.0
    %1200 = vmatpush1.msra.mxu0 0.0
    %1201 = vmatprep.mubr.f32.mxu0 0.0
    %1202 = vmatmul.mubr.f32.gmra.mrb[0].mxu0 %v1131
    %v1203 = vpop.f32.mrb[0].mxu0
    %v1204 = vadd.f32 0.0, %v1203
    %v1205 = vpop.f32.mrb[0].mxu0
    %v1206 = vadd.f32 0.0, %v1205
    %1207 = vdwg.mxu0
    %1208 = vmatprep.subr.mxu0 %v551
    %1209 = vmatpush1.msra.mxu0 %v550
    %1210 = vmatprep.subr.mxu0 %v555
    %1211 = vmatpush1.msra.mxu0 %v554
    %1212 = vmatprep.subr.mxu0 %v559
    %1213 = vmatpush1.msra.mxu0 %v558
    %1214 = vmatprep.subr.mxu0 %v563
    %1215 = vmatpush1.msra.mxu0 %v562
    %1216 = vmatprep.subr.mxu0 %v567
    %1217 = vmatpush1.msra.mxu0 %v566
    %1218 = vmatprep.subr.mxu0 %v571
    %1219 = vmatpush1.msra.mxu0 %v570
    %1220 = vmatprep.subr.mxu0 %v575
    %1221 = vmatpush1.msra.mxu0 %v574
    %1222 = vmatprep.subr.mxu0 %v579
    %1223 = vmatpush1.msra.mxu0 %v578
    %1224 = vmatprep.subr.mxu0 %v583
    %1225 = vmatpush1.msra.mxu0 %v582
    %1226 = vmatprep.subr.mxu0 %v587
    %1227 = vmatpush1.msra.mxu0 %v586
    %1228 = vmatprep.subr.mxu0 %v591
    %1229 = vmatpush1.msra.mxu0 %v590
    %1230 = vmatprep.subr.mxu0 %v595
    %1231 = vmatpush1.msra.mxu0 %v594
    %1232 = vmatprep.subr.mxu0 %v599
    %1233 = vmatpush1.msra.mxu0 %v598
    %1234 = vmatprep.subr.mxu0 %v603
    %1235 = vmatpush1.msra.mxu0 %v602
    %1236 = vmatprep.subr.mxu0 %v607
    %1237 = vmatpush1.msra.mxu0 %v606
    %1238 = vmatprep.subr.mxu0 %v611
    %1239 = vmatpush1.msra.mxu0 %v610
    %1240 = vmatprep.subr.mxu0 0.0
    %1241 = vmatpush1.msra.mxu0 0.0
    %1242 = vmatprep.subr.mxu0 0.0
    %1243 = vmatpush1.msra.mxu0 0.0
    %1244 = vmatprep.subr.mxu0 0.0
    %1245 = vmatpush1.msra.mxu0 0.0
    %1246 = vmatprep.subr.mxu0 0.0
    %1247 = vmatpush1.msra.mxu0 0.0
    %1248 = vmatprep.subr.mxu0 0.0
    %1249 = vmatpush1.msra.mxu0 0.0
    %1250 = vmatprep.subr.mxu0 0.0
    %1251 = vmatpush1.msra.mxu0 0.0
    %1252 = vmatprep.subr.mxu0 0.0
    %1253 = vmatpush1.msra.mxu0 0.0
    %1254 = vmatprep.subr.mxu0 0.0
    %1255 = vmatpush1.msra.mxu0 0.0
    %1256 = vmatprep.subr.mxu0 0.0
    %1257 = vmatpush1.msra.mxu0 0.0
    %1258 = vmatprep.subr.mxu0 0.0
    %1259 = vmatpush1.msra.mxu0 0.0
    %1260 = vmatprep.subr.mxu0 0.0
    %1261 = vmatpush1.msra.mxu0 0.0
    %1262 = vmatprep.subr.mxu0 0.0
    %1263 = vmatpush1.msra.mxu0 0.0
    %1264 = vmatprep.subr.mxu0 0.0
    %1265 = vmatpush1.msra.mxu0 0.0
    %1266 = vmatprep.subr.mxu0 0.0
    %1267 = vmatpush1.msra.mxu0 0.0
    %1268 = vmatprep.subr.mxu0 0.0
    %1269 = vmatpush1.msra.mxu0 0.0
    %1270 = vmatprep.subr.mxu0 0.0
    %1271 = vmatpush1.msra.mxu0 0.0
    %1272 = vmatprep.mubr.f32.mxu0 0.0
    %1273 = vmatmul.mubr.f32.gmra.mrb[0].mxu0 %v1131
    %v1274 = vpop.f32.mrb[0].mxu0
    %v1275 = vadd.f32 0.0, %v1274
    %v1276 = vpop.f32.mrb[0].mxu0
    %v1277 = vadd.f32 0.0, %v1276
    %1278 = vdwg.mxu0
    %v1279 = vadd.f32 %v1133, %v1204
    %v1280 = vadd.f32 %v1134, %v1206
    %v1281 = vadd.f32 %v1135, %v1275
    %v1282 = vadd.f32 %v1136, %v1277
    %v1283 = vxor.u32 %v1279, 2147483648
    %v1284 = vmul.f32 %v1283, 1.442695
    %v1285 = vpow.pop %v1284
    %v1286 = vadd.f32 %v1285, 1.0
    %v1287 = vrcp.pop %v1286
    %v1288 = vmul.f32 1.0, %v1287
    %v1289 = vxor.u32 %v1280, 2147483648
    %v1290 = vmul.f32 %v1289, 1.442695
    %v1291 = vpow.pop %v1290
    %v1292 = vadd.f32 %v1291, 1.0
    %v1293 = vrcp.pop %v1292
    %v1294 = vmul.f32 1.0, %v1293
    %v1295 = vtanh.pop %v1281
    %v1296 = vxor.u32 %v1282, 2147483648
    %v1297 = vmul.f32 %v1296, 1.442695
    %v1298 = vpow.pop %v1297
    %v1299 = vadd.f32 %v1298, 1.0
    %v1300 = vrcp.pop %v1299
    %v1301 = vmul.f32 1.0, %v1300
    %v1302 = vmul.f32 %v1294, %v1129
    %v1303 = vmul.f32 %v1288, %v1295
    %v1304 = vadd.f32 %v1302, %v1303
    %v1305 = vtanh.pop %v1304
    %v1306 = vmul.f32 %v1301, %v1305
    %s1307 = scalar_lea.vmem [#allocation4], 128
    %v1308 = vld [vmem:[%s1307] sm:$0xff]
    %v1309 = vld [vmem:[%s1307 + $0x8] sm:$0xff]
    %v1310 = vld [vmem:[%s1307 + $0x10] sm:$0xff]
    %v1311 = vld [vmem:[%s1307 + $0x18] sm:$0xff]
    %1312 = vmatprep.subr.mxu0 %v549
    %1313 = vmatpush1.msra.mxu0 %v548
    %1314 = vmatprep.subr.mxu0 %v553
    %1315 = vmatpush1.msra.mxu0 %v552
    %1316 = vmatprep.subr.mxu0 %v557
    %1317 = vmatpush1.msra.mxu0 %v556
    %1318 = vmatprep.subr.mxu0 %v561
    %1319 = vmatpush1.msra.mxu0 %v560
    %1320 = vmatprep.subr.mxu0 %v565
    %1321 = vmatpush1.msra.mxu0 %v564
    %1322 = vmatprep.subr.mxu0 %v569
    %1323 = vmatpush1.msra.mxu0 %v568
    %1324 = vmatprep.subr.mxu0 %v573
    %1325 = vmatpush1.msra.mxu0 %v572
    %1326 = vmatprep.subr.mxu0 %v577
    %1327 = vmatpush1.msra.mxu0 %v576
    %1328 = vmatprep.subr.mxu0 %v581
    %1329 = vmatpush1.msra.mxu0 %v580
    %1330 = vmatprep.subr.mxu0 %v585
    %1331 = vmatpush1.msra.mxu0 %v584
    %1332 = vmatprep.subr.mxu0 %v589
    %1333 = vmatpush1.msra.mxu0 %v588
    %1334 = vmatprep.subr.mxu0 %v593
    %1335 = vmatpush1.msra.mxu0 %v592
    %1336 = vmatprep.subr.mxu0 %v597
    %1337 = vmatpush1.msra.mxu0 %v596
    %1338 = vmatprep.subr.mxu0 %v601
    %1339 = vmatpush1.msra.mxu0 %v600
    %1340 = vmatprep.subr.mxu0 %v605
    %1341 = vmatpush1.msra.mxu0 %v604
    %1342 = vmatprep.subr.mxu0 %v609
    %1343 = vmatpush1.msra.mxu0 %v608
    %1344 = vmatprep.subr.mxu0 0.0
    %1345 = vmatpush1.msra.mxu0 0.0
    %1346 = vmatprep.subr.mxu0 0.0
    %1347 = vmatpush1.msra.mxu0 0.0
    %1348 = vmatprep.subr.mxu0 0.0
    %1349 = vmatpush1.msra.mxu0 0.0
    %1350 = vmatprep.subr.mxu0 0.0
    %1351 = vmatpush1.msra.mxu0 0.0
    %1352 = vmatprep.subr.mxu0 0.0
    %1353 = vmatpush1.msra.mxu0 0.0
    %1354 = vmatprep.subr.mxu0 0.0
    %1355 = vmatpush1.msra.mxu0 0.0
    %1356 = vmatprep.subr.mxu0 0.0
    %1357 = vmatpush1.msra.mxu0 0.0
    %1358 = vmatprep.subr.mxu0 0.0
    %1359 = vmatpush1.msra.mxu0 0.0
    %1360 = vmatprep.subr.mxu0 0.0
    %1361 = vmatpush1.msra.mxu0 0.0
    %1362 = vmatprep.subr.mxu0 0.0
    %1363 = vmatpush1.msra.mxu0 0.0
    %1364 = vmatprep.subr.mxu0 0.0
    %1365 = vmatpush1.msra.mxu0 0.0
    %1366 = vmatprep.subr.mxu0 0.0
    %1367 = vmatpush1.msra.mxu0 0.0
    %1368 = vmatprep.subr.mxu0 0.0
    %1369 = vmatpush1.msra.mxu0 0.0
    %1370 = vmatprep.subr.mxu0 0.0
    %1371 = vmatpush1.msra.mxu0 0.0
    %1372 = vmatprep.subr.mxu0 0.0
    %1373 = vmatpush1.msra.mxu0 0.0
    %1374 = vmatprep.subr.mxu0 0.0
    %1375 = vmatpush1.msra.mxu0 0.0
    %1376 = vmatprep.mubr.f32.mxu0 0.0
    %1377 = vmatmul.mubr.f32.gmra.mrb[0].mxu0 %v1306
    %v1378 = vpop.f32.mrb[0].mxu0
    %v1379 = vadd.f32 0.0, %v1378
    %v1380 = vpop.f32.mrb[0].mxu0
    %v1381 = vadd.f32 0.0, %v1380
    %1382 = vdwg.mxu0
    %1383 = vmatprep.subr.mxu0 %v551
    %1384 = vmatpush1.msra.mxu0 %v550
    %1385 = vmatprep.subr.mxu0 %v555
    %1386 = vmatpush1.msra.mxu0 %v554
    %1387 = vmatprep.subr.mxu0 %v559
    %1388 = vmatpush1.msra.mxu0 %v558
    %1389 = vmatprep.subr.mxu0 %v563
    %1390 = vmatpush1.msra.mxu0 %v562
    %1391 = vmatprep.subr.mxu0 %v567
    %1392 = vmatpush1.msra.mxu0 %v566
    %1393 = vmatprep.subr.mxu0 %v571
    %1394 = vmatpush1.msra.mxu0 %v570
    %1395 = vmatprep.subr.mxu0 %v575
    %1396 = vmatpush1.msra.mxu0 %v574
    %1397 = vmatprep.subr.mxu0 %v579
    %1398 = vmatpush1.msra.mxu0 %v578
    %1399 = vmatprep.subr.mxu0 %v583
    %1400 = vmatpush1.msra.mxu0 %v582
    %1401 = vmatprep.subr.mxu0 %v587
    %1402 = vmatpush1.msra.mxu0 %v586
    %1403 = vmatprep.subr.mxu0 %v591
    %1404 = vmatpush1.msra.mxu0 %v590
    %1405 = vmatprep.subr.mxu0 %v595
    %1406 = vmatpush1.msra.mxu0 %v594
    %1407 = vmatprep.subr.mxu0 %v599
    %1408 = vmatpush1.msra.mxu0 %v598
    %1409 = vmatprep.subr.mxu0 %v603
    %1410 = vmatpush1.msra.mxu0 %v602
    %1411 = vmatprep.subr.mxu0 %v607
    %1412 = vmatpush1.msra.mxu0 %v606
    %1413 = vmatprep.subr.mxu0 %v611
    %1414 = vmatpush1.msra.mxu0 %v610
    %1415 = vmatprep.subr.mxu0 0.0
    %1416 = vmatpush1.msra.mxu0 0.0
    %1417 = vmatprep.subr.mxu0 0.0
    %1418 = vmatpush1.msra.mxu0 0.0
    %1419 = vmatprep.subr.mxu0 0.0
    %1420 = vmatpush1.msra.mxu0 0.0
    %1421 = vmatprep.subr.mxu0 0.0
    %1422 = vmatpush1.msra.mxu0 0.0
    %1423 = vmatprep.subr.mxu0 0.0
    %1424 = vmatpush1.msra.mxu0 0.0
    %1425 = vmatprep.subr.mxu0 0.0
    %1426 = vmatpush1.msra.mxu0 0.0
    %1427 = vmatprep.subr.mxu0 0.0
    %1428 = vmatpush1.msra.mxu0 0.0
    %1429 = vmatprep.subr.mxu0 0.0
    %1430 = vmatpush1.msra.mxu0 0.0
    %1431 = vmatprep.subr.mxu0 0.0
    %1432 = vmatpush1.msra.mxu0 0.0
    %1433 = vmatprep.subr.mxu0 0.0
    %1434 = vmatpush1.msra.mxu0 0.0
    %1435 = vmatprep.subr.mxu0 0.0
    %1436 = vmatpush1.msra.mxu0 0.0
    %1437 = vmatprep.subr.mxu0 0.0
    %1438 = vmatpush1.msra.mxu0 0.0
    %1439 = vmatprep.subr.mxu0 0.0
    %1440 = vmatpush1.msra.mxu0 0.0
    %1441 = vmatprep.subr.mxu0 0.0
    %1442 = vmatpush1.msra.mxu0 0.0
    %1443 = vmatprep.subr.mxu0 0.0
    %1444 = vmatpush1.msra.mxu0 0.0
    %1445 = vmatprep.subr.mxu0 0.0
    %1446 = vmatpush1.msra.mxu0 0.0
    %1447 = vmatprep.mubr.f32.mxu0 0.0
    %1448 = vmatmul.mubr.f32.gmra.mrb[0].mxu0 %v1306
    %v1449 = vpop.f32.mrb[0].mxu0
    %v1450 = vadd.f32 0.0, %v1449
    %v1451 = vpop.f32.mrb[0].mxu0
    %v1452 = vadd.f32 0.0, %v1451
    %1453 = vdwg.mxu0
    %v1454 = vadd.f32 %v1308, %v1379
    %v1455 = vadd.f32 %v1309, %v1381
    %v1456 = vadd.f32 %v1310, %v1450
    %v1457 = vadd.f32 %v1311, %v1452
    %v1458 = vxor.u32 %v1454, 2147483648
    %v1459 = vmul.f32 %v1458, 1.442695
    %v1460 = vpow.pop %v1459
    %v1461 = vadd.f32 %v1460, 1.0
    %v1462 = vrcp.pop %v1461
    %v1463 = vmul.f32 1.0, %v1462
    %v1464 = vxor.u32 %v1455, 2147483648
    %v1465 = vmul.f32 %v1464, 1.442695
    %v1466 = vpow.pop %v1465
    %v1467 = vadd.f32 %v1466, 1.0
    %v1468 = vrcp.pop %v1467
    %v1469 = vmul.f32 1.0, %v1468
    %v1470 = vtanh.pop %v1456
    %v1471 = vxor.u32 %v1457, 2147483648
    %v1472 = vmul.f32 %v1471, 1.442695
    %v1473 = vpow.pop %v1472
    %v1474 = vadd.f32 %v1473, 1.0
    %v1475 = vrcp.pop %v1474
    %v1476 = vmul.f32 1.0, %v1475
    %v1477 = vmul.f32 %v1469, %v1304
    %v1478 = vmul.f32 %v1463, %v1470
    %v1479 = vadd.f32 %v1477, %v1478
    %v1480 = vtanh.pop %v1479
    %v1481 = vmul.f32 %v1476, %v1480
    %s1482 = scalar_lea.vmem [#allocation4], 160
    %v1483 = vld [vmem:[%s1482] sm:$0xff]
    %v1484 = vld [vmem:[%s1482 + $0x8] sm:$0xff]
    %v1485 = vld [vmem:[%s1482 + $0x10] sm:$0xff]
    %v1486 = vld [vmem:[%s1482 + $0x18] sm:$0xff]
    %1487 = vmatprep.subr.mxu0 %v549
    %1488 = vmatpush1.msra.mxu0 %v548
    %1489 = vmatprep.subr.mxu0 %v553
    %1490 = vmatpush1.msra.mxu0 %v552
    %1491 = vmatprep.subr.mxu0 %v557
    %1492 = vmatpush1.msra.mxu0 %v556
    %1493 = vmatprep.subr.mxu0 %v561
    %1494 = vmatpush1.msra.mxu0 %v560
    %1495 = vmatprep.subr.mxu0 %v565
    %1496 = vmatpush1.msra.mxu0 %v564
    %1497 = vmatprep.subr.mxu0 %v569
    %1498 = vmatpush1.msra.mxu0 %v568
    %1499 = vmatprep.subr.mxu0 %v573
    %1500 = vmatpush1.msra.mxu0 %v572
    %1501 = vmatprep.subr.mxu0 %v577
    %1502 = vmatpush1.msra.mxu0 %v576
    %1503 = vmatprep.subr.mxu0 %v581
    %1504 = vmatpush1.msra.mxu0 %v580
    %1505 = vmatprep.subr.mxu0 %v585
    %1506 = vmatpush1.msra.mxu0 %v584
    %1507 = vmatprep.subr.mxu0 %v589
    %1508 = vmatpush1.msra.mxu0 %v588
    %1509 = vmatprep.subr.mxu0 %v593
    %1510 = vmatpush1.msra.mxu0 %v592
    %1511 = vmatprep.subr.mxu0 %v597
    %1512 = vmatpush1.msra.mxu0 %v596
    %1513 = vmatprep.subr.mxu0 %v601
    %1514 = vmatpush1.msra.mxu0 %v600
    %1515 = vmatprep.subr.mxu0 %v605
    %1516 = vmatpush1.msra.mxu0 %v604
    %1517 = vmatprep.subr.mxu0 %v609
    %1518 = vmatpush1.msra.mxu0 %v608
    %1519 = vmatprep.subr.mxu0 0.0
    %1520 = vmatpush1.msra.mxu0 0.0
    %1521 = vmatprep.subr.mxu0 0.0
    %1522 = vmatpush1.msra.mxu0 0.0
    %1523 = vmatprep.subr.mxu0 0.0
    %1524 = vmatpush1.msra.mxu0 0.0
    %1525 = vmatprep.subr.mxu0 0.0
    %1526 = vmatpush1.msra.mxu0 0.0
    %1527 = vmatprep.subr.mxu0 0.0
    %1528 = vmatpush1.msra.mxu0 0.0
    %1529 = vmatprep.subr.mxu0 0.0
    %1530 = vmatpush1.msra.mxu0 0.0
    %1531 = vmatprep.subr.mxu0 0.0
    %1532 = vmatpush1.msra.mxu0 0.0
    %1533 = vmatprep.subr.mxu0 0.0
    %1534 = vmatpush1.msra.mxu0 0.0
    %1535 = vmatprep.subr.mxu0 0.0
    %1536 = vmatpush1.msra.mxu0 0.0
    %1537 = vmatprep.subr.mxu0 0.0
    %1538 = vmatpush1.msra.mxu0 0.0
    %1539 = vmatprep.subr.mxu0 0.0
    %1540 = vmatpush1.msra.mxu0 0.0
    %1541 = vmatprep.subr.mxu0 0.0
    %1542 = vmatpush1.msra.mxu0 0.0
    %1543 = vmatprep.subr.mxu0 0.0
    %1544 = vmatpush1.msra.mxu0 0.0
    %1545 = vmatprep.subr.mxu0 0.0
    %1546 = vmatpush1.msra.mxu0 0.0
    %1547 = vmatprep.subr.mxu0 0.0
    %1548 = vmatpush1.msra.mxu0 0.0
    %1549 = vmatprep.subr.mxu0 0.0
    %1550 = vmatpush1.msra.mxu0 0.0
    %1551 = vmatprep.mubr.f32.mxu0 0.0
    %1552 = vmatmul.mubr.f32.gmra.mrb[0].mxu0 %v1481
    %v1553 = vpop.f32.mrb[0].mxu0
    %v1554 = vadd.f32 0.0, %v1553
    %v1555 = vpop.f32.mrb[0].mxu0
    %v1556 = vadd.f32 0.0, %v1555
    %1557 = vdwg.mxu0
    %1558 = vmatprep.subr.mxu0 %v551
    %1559 = vmatpush1.msra.mxu0 %v550
    %1560 = vmatprep.subr.mxu0 %v555
    %1561 = vmatpush1.msra.mxu0 %v554
    %1562 = vmatprep.subr.mxu0 %v559
    %1563 = vmatpush1.msra.mxu0 %v558
    %1564 = vmatprep.subr.mxu0 %v563
    %1565 = vmatpush1.msra.mxu0 %v562
    %1566 = vmatprep.subr.mxu0 %v567
    %1567 = vmatpush1.msra.mxu0 %v566
    %1568 = vmatprep.subr.mxu0 %v571
    %1569 = vmatpush1.msra.mxu0 %v570
    %1570 = vmatprep.subr.mxu0 %v575
    %1571 = vmatpush1.msra.mxu0 %v574
    %1572 = vmatprep.subr.mxu0 %v579
    %1573 = vmatpush1.msra.mxu0 %v578
    %1574 = vmatprep.subr.mxu0 %v583
    %1575 = vmatpush1.msra.mxu0 %v582
    %1576 = vmatprep.subr.mxu0 %v587
    %1577 = vmatpush1.msra.mxu0 %v586
    %1578 = vmatprep.subr.mxu0 %v591
    %1579 = vmatpush1.msra.mxu0 %v590
    %1580 = vmatprep.subr.mxu0 %v595
    %1581 = vmatpush1.msra.mxu0 %v594
    %1582 = vmatprep.subr.mxu0 %v599
    %1583 = vmatpush1.msra.mxu0 %v598
    %1584 = vmatprep.subr.mxu0 %v603
    %1585 = vmatpush1.msra.mxu0 %v602
    %1586 = vmatprep.subr.mxu0 %v607
    %1587 = vmatpush1.msra.mxu0 %v606
    %1588 = vmatprep.subr.mxu0 %v611
    %1589 = vmatpush1.msra.mxu0 %v610
    %1590 = vmatprep.subr.mxu0 0.0
    %1591 = vmatpush1.msra.mxu0 0.0
    %1592 = vmatprep.subr.mxu0 0.0
    %1593 = vmatpush1.msra.mxu0 0.0
    %1594 = vmatprep.subr.mxu0 0.0
    %1595 = vmatpush1.msra.mxu0 0.0
    %1596 = vmatprep.subr.mxu0 0.0
    %1597 = vmatpush1.msra.mxu0 0.0
    %1598 = vmatprep.subr.mxu0 0.0
    %1599 = vmatpush1.msra.mxu0 0.0
    %1600 = vmatprep.subr.mxu0 0.0
    %1601 = vmatpush1.msra.mxu0 0.0
    %1602 = vmatprep.subr.mxu0 0.0
    %1603 = vmatpush1.msra.mxu0 0.0
    %1604 = vmatprep.subr.mxu0 0.0
    %1605 = vmatpush1.msra.mxu0 0.0
    %1606 = vmatprep.subr.mxu0 0.0
    %1607 = vmatpush1.msra.mxu0 0.0
    %1608 = vmatprep.subr.mxu0 0.0
    %1609 = vmatpush1.msra.mxu0 0.0
    %1610 = vmatprep.subr.mxu0 0.0
    %1611 = vmatpush1.msra.mxu0 0.0
    %1612 = vmatprep.subr.mxu0 0.0
    %1613 = vmatpush1.msra.mxu0 0.0
    %1614 = vmatprep.subr.mxu0 0.0
    %1615 = vmatpush1.msra.mxu0 0.0
    %1616 = vmatprep.subr.mxu0 0.0
    %1617 = vmatpush1.msra.mxu0 0.0
    %1618 = vmatprep.subr.mxu0 0.0
    %1619 = vmatpush1.msra.mxu0 0.0
    %1620 = vmatprep.subr.mxu0 0.0
    %1621 = vmatpush1.msra.mxu0 0.0
    %1622 = vmatprep.mubr.f32.mxu0 0.0
    %1623 = vmatmul.mubr.f32.gmra.mrb[0].mxu0 %v1481
    %v1624 = vpop.f32.mrb[0].mxu0
    %v1625 = vadd.f32 0.0, %v1624
    %v1626 = vpop.f32.mrb[0].mxu0
    %v1627 = vadd.f32 0.0, %v1626
    %1628 = vdwg.mxu0
    %v1629 = vadd.f32 %v1483, %v1554
    %v1630 = vadd.f32 %v1484, %v1556
    %v1631 = vadd.f32 %v1485, %v1625
    %v1632 = vadd.f32 %v1486, %v1627
    %v1633 = vxor.u32 %v1629, 2147483648
    %v1634 = vmul.f32 %v1633, 1.442695
    %v1635 = vpow.pop %v1634
    %v1636 = vadd.f32 %v1635, 1.0
    %v1637 = vrcp.pop %v1636
    %v1638 = vmul.f32 1.0, %v1637
    %v1639 = vxor.u32 %v1630, 2147483648
    %v1640 = vmul.f32 %v1639, 1.442695
    %v1641 = vpow.pop %v1640
    %v1642 = vadd.f32 %v1641, 1.0
    %v1643 = vrcp.pop %v1642
    %v1644 = vmul.f32 1.0, %v1643
    %v1645 = vtanh.pop %v1631
    %v1646 = vxor.u32 %v1632, 2147483648
    %v1647 = vmul.f32 %v1646, 1.442695
    %v1648 = vpow.pop %v1647
    %v1649 = vadd.f32 %v1648, 1.0
    %v1650 = vrcp.pop %v1649
    %v1651 = vmul.f32 1.0, %v1650
    %v1652 = vmul.f32 %v1644, %v1479
    %v1653 = vmul.f32 %v1638, %v1645
    %v1654 = vadd.f32 %v1652, %v1653
    %v1655 = vtanh.pop %v1654
    %v1656 = vmul.f32 %v1651, %v1655
    %s1657 = scalar_lea.vmem [#allocation4], 192
    %v1658 = vld [vmem:[%s1657] sm:$0xff]
    %v1659 = vld [vmem:[%s1657 + $0x8] sm:$0xff]
    %v1660 = vld [vmem:[%s1657 + $0x10] sm:$0xff]
    %v1661 = vld [vmem:[%s1657 + $0x18] sm:$0xff]
    %1662 = vmatprep.subr.mxu0 %v549
    %1663 = vmatpush1.msra.mxu0 %v548
    %1664 = vmatprep.subr.mxu0 %v553
    %1665 = vmatpush1.msra.mxu0 %v552
    %1666 = vmatprep.subr.mxu0 %v557
    %1667 = vmatpush1.msra.mxu0 %v556
    %1668 = vmatprep.subr.mxu0 %v561
    %1669 = vmatpush1.msra.mxu0 %v560
    %1670 = vmatprep.subr.mxu0 %v565
    %1671 = vmatpush1.msra.mxu0 %v564
    %1672 = vmatprep.subr.mxu0 %v569
    %1673 = vmatpush1.msra.mxu0 %v568
    %1674 = vmatprep.subr.mxu0 %v573
    %1675 = vmatpush1.msra.mxu0 %v572
    %1676 = vmatprep.subr.mxu0 %v577
    %1677 = vmatpush1.msra.mxu0 %v576
    %1678 = vmatprep.subr.mxu0 %v581
    %1679 = vmatpush1.msra.mxu0 %v580
    %1680 = vmatprep.subr.mxu0 %v585
    %1681 = vmatpush1.msra.mxu0 %v584
    %1682 = vmatprep.subr.mxu0 %v589
    %1683 = vmatpush1.msra.mxu0 %v588
    %1684 = vmatprep.subr.mxu0 %v593
    %1685 = vmatpush1.msra.mxu0 %v592
    %1686 = vmatprep.subr.mxu0 %v597
    %1687 = vmatpush1.msra.mxu0 %v596
    %1688 = vmatprep.subr.mxu0 %v601
    %1689 = vmatpush1.msra.mxu0 %v600
    %1690 = vmatprep.subr.mxu0 %v605
    %1691 = vmatpush1.msra.mxu0 %v604
    %1692 = vmatprep.subr.mxu0 %v609
    %1693 = vmatpush1.msra.mxu0 %v608
    %1694 = vmatprep.subr.mxu0 0.0
    %1695 = vmatpush1.msra.mxu0 0.0
    %1696 = vmatprep.subr.mxu0 0.0
    %1697 = vmatpush1.msra.mxu0 0.0
    %1698 = vmatprep.subr.mxu0 0.0
    %1699 = vmatpush1.msra.mxu0 0.0
    %1700 = vmatprep.subr.mxu0 0.0
    %1701 = vmatpush1.msra.mxu0 0.0
    %1702 = vmatprep.subr.mxu0 0.0
    %1703 = vmatpush1.msra.mxu0 0.0
    %1704 = vmatprep.subr.mxu0 0.0
    %1705 = vmatpush1.msra.mxu0 0.0
    %1706 = vmatprep.subr.mxu0 0.0
    %1707 = vmatpush1.msra.mxu0 0.0
    %1708 = vmatprep.subr.mxu0 0.0
    %1709 = vmatpush1.msra.mxu0 0.0
    %1710 = vmatprep.subr.mxu0 0.0
    %1711 = vmatpush1.msra.mxu0 0.0
    %1712 = vmatprep.subr.mxu0 0.0
    %1713 = vmatpush1.msra.mxu0 0.0
    %1714 = vmatprep.subr.mxu0 0.0
    %1715 = vmatpush1.msra.mxu0 0.0
    %1716 = vmatprep.subr.mxu0 0.0
    %1717 = vmatpush1.msra.mxu0 0.0
    %1718 = vmatprep.subr.mxu0 0.0
    %1719 = vmatpush1.msra.mxu0 0.0
    %1720 = vmatprep.subr.mxu0 0.0
    %1721 = vmatpush1.msra.mxu0 0.0
    %1722 = vmatprep.subr.mxu0 0.0
    %1723 = vmatpush1.msra.mxu0 0.0
    %1724 = vmatprep.subr.mxu0 0.0
    %1725 = vmatpush1.msra.mxu0 0.0
    %1726 = vmatprep.mubr.f32.mxu0 0.0
    %1727 = vmatmul.mubr.f32.gmra.mrb[0].mxu0 %v1656
    %v1728 = vpop.f32.mrb[0].mxu0
    %v1729 = vadd.f32 0.0, %v1728
    %v1730 = vpop.f32.mrb[0].mxu0
    %v1731 = vadd.f32 0.0, %v1730
    %1732 = vdwg.mxu0
    %1733 = vmatprep.subr.mxu0 %v551
    %1734 = vmatpush1.msra.mxu0 %v550
    %1735 = vmatprep.subr.mxu0 %v555
    %1736 = vmatpush1.msra.mxu0 %v554
    %1737 = vmatprep.subr.mxu0 %v559
    %1738 = vmatpush1.msra.mxu0 %v558
    %1739 = vmatprep.subr.mxu0 %v563
    %1740 = vmatpush1.msra.mxu0 %v562
    %1741 = vmatprep.subr.mxu0 %v567
    %1742 = vmatpush1.msra.mxu0 %v566
    %1743 = vmatprep.subr.mxu0 %v571
    %1744 = vmatpush1.msra.mxu0 %v570
    %1745 = vmatprep.subr.mxu0 %v575
    %1746 = vmatpush1.msra.mxu0 %v574
    %1747 = vmatprep.subr.mxu0 %v579
    %1748 = vmatpush1.msra.mxu0 %v578
    %1749 = vmatprep.subr.mxu0 %v583
    %1750 = vmatpush1.msra.mxu0 %v582
    %1751 = vmatprep.subr.mxu0 %v587
    %1752 = vmatpush1.msra.mxu0 %v586
    %1753 = vmatprep.subr.mxu0 %v591
    %1754 = vmatpush1.msra.mxu0 %v590
    %1755 = vmatprep.subr.mxu0 %v595
    %1756 = vmatpush1.msra.mxu0 %v594
    %1757 = vmatprep.subr.mxu0 %v599
    %1758 = vmatpush1.msra.mxu0 %v598
    %1759 = vmatprep.subr.mxu0 %v603
    %1760 = vmatpush1.msra.mxu0 %v602
    %1761 = vmatprep.subr.mxu0 %v607
    %1762 = vmatpush1.msra.mxu0 %v606
    %1763 = vmatprep.subr.mxu0 %v611
    %1764 = vmatpush1.msra.mxu0 %v610
    %1765 = vmatprep.subr.mxu0 0.0
    %1766 = vmatpush1.msra.mxu0 0.0
    %1767 = vmatprep.subr.mxu0 0.0
    %1768 = vmatpush1.msra.mxu0 0.0
    %1769 = vmatprep.subr.mxu0 0.0
    %1770 = vmatpush1.msra.mxu0 0.0
    %1771 = vmatprep.subr.mxu0 0.0
    %1772 = vmatpush1.msra.mxu0 0.0
    %1773 = vmatprep.subr.mxu0 0.0
    %1774 = vmatpush1.msra.mxu0 0.0
    %1775 = vmatprep.subr.mxu0 0.0
    %1776 = vmatpush1.msra.mxu0 0.0
    %1777 = vmatprep.subr.mxu0 0.0
    %1778 = vmatpush1.msra.mxu0 0.0
    %1779 = vmatprep.subr.mxu0 0.0
    %1780 = vmatpush1.msra.mxu0 0.0
    %1781 = vmatprep.subr.mxu0 0.0
    %1782 = vmatpush1.msra.mxu0 0.0
    %1783 = vmatprep.subr.mxu0 0.0
    %1784 = vmatpush1.msra.mxu0 0.0
    %1785 = vmatprep.subr.mxu0 0.0
    %1786 = vmatpush1.msra.mxu0 0.0
    %1787 = vmatprep.subr.mxu0 0.0
    %1788 = vmatpush1.msra.mxu0 0.0
    %1789 = vmatprep.subr.mxu0 0.0
    %1790 = vmatpush1.msra.mxu0 0.0
    %1791 = vmatprep.subr.mxu0 0.0
    %1792 = vmatpush1.msra.mxu0 0.0
    %1793 = vmatprep.subr.mxu0 0.0
    %1794 = vmatpush1.msra.mxu0 0.0
    %1795 = vmatprep.subr.mxu0 0.0
    %1796 = vmatpush1.msra.mxu0 0.0
    %1797 = vmatprep.mubr.f32.mxu0 0.0
    %1798 = vmatmul.mubr.f32.gmra.mrb[0].mxu0 %v1656
    %v1799 = vpop.f32.mrb[0].mxu0
    %v1800 = vadd.f32 0.0, %v1799
    %v1801 = vpop.f32.mrb[0].mxu0
    %v1802 = vadd.f32 0.0, %v1801
    %1803 = vdwg.mxu0
    %v1804 = vadd.f32 %v1658, %v1729
    %v1805 = vadd.f32 %v1659, %v1731
    %v1806 = vadd.f32 %v1660, %v1800
    %v1807 = vadd.f32 %v1661, %v1802
    %v1808 = vxor.u32 %v1804, 2147483648
    %v1809 = vmul.f32 %v1808, 1.442695
    %v1810 = vpow.pop %v1809
    %v1811 = vadd.f32 %v1810, 1.0
    %v1812 = vrcp.pop %v1811
    %v1813 = vmul.f32 1.0, %v1812
    %v1814 = vxor.u32 %v1805, 2147483648
    %v1815 = vmul.f32 %v1814, 1.442695
    %v1816 = vpow.pop %v1815
    %v1817 = vadd.f32 %v1816, 1.0
    %v1818 = vrcp.pop %v1817
    %v1819 = vmul.f32 1.0, %v1818
    %v1820 = vtanh.pop %v1806
    %v1821 = vxor.u32 %v1807, 2147483648
    %v1822 = vmul.f32 %v1821, 1.442695
    %v1823 = vpow.pop %v1822
    %v1824 = vadd.f32 %v1823, 1.0
    %v1825 = vrcp.pop %v1824
    %v1826 = vmul.f32 1.0, %v1825
    %v1827 = vmul.f32 %v1819, %v1654
    %v1828 = vmul.f32 %v1813, %v1820
    %v1829 = vadd.f32 %v1827, %v1828
    %v1830 = vtanh.pop %v1829
    %v1831 = vmul.f32 %v1826, %v1830
    %s1832 = scalar_lea.vmem [#allocation4], 224
    %v1833 = vld [vmem:[%s1832] sm:$0xff]
    %v1834 = vld [vmem:[%s1832 + $0x8] sm:$0xff]
    %v1835 = vld [vmem:[%s1832 + $0x10] sm:$0xff]
    %v1836 = vld [vmem:[%s1832 + $0x18] sm:$0xff]
    %1837 = vmatprep.subr.mxu0 %v549
    %1838 = vmatpush1.msra.mxu0 %v548
    %1839 = vmatprep.subr.mxu0 %v553
    %1840 = vmatpush1.msra.mxu0 %v552
    %1841 = vmatprep.subr.mxu0 %v557
    %1842 = vmatpush1.msra.mxu0 %v556
    %1843 = vmatprep.subr.mxu0 %v561
    %1844 = vmatpush1.msra.mxu0 %v560
    %1845 = vmatprep.subr.mxu0 %v565
    %1846 = vmatpush1.msra.mxu0 %v564
    %1847 = vmatprep.subr.mxu0 %v569
    %1848 = vmatpush1.msra.mxu0 %v568
    %1849 = vmatprep.subr.mxu0 %v573
    %1850 = vmatpush1.msra.mxu0 %v572
    %1851 = vmatprep.subr.mxu0 %v577
    %1852 = vmatpush1.msra.mxu0 %v576
    %1853 = vmatprep.subr.mxu0 %v581
    %1854 = vmatpush1.msra.mxu0 %v580
    %1855 = vmatprep.subr.mxu0 %v585
    %1856 = vmatpush1.msra.mxu0 %v584
    %1857 = vmatprep.subr.mxu0 %v589
    %1858 = vmatpush1.msra.mxu0 %v588
    %1859 = vmatprep.subr.mxu0 %v593
    %1860 = vmatpush1.msra.mxu0 %v592
    %1861 = vmatprep.subr.mxu0 %v597
    %1862 = vmatpush1.msra.mxu0 %v596
    %1863 = vmatprep.subr.mxu0 %v601
    %1864 = vmatpush1.msra.mxu0 %v600
    %1865 = vmatprep.subr.mxu0 %v605
    %1866 = vmatpush1.msra.mxu0 %v604
    %1867 = vmatprep.subr.mxu0 %v609
    %1868 = vmatpush1.msra.mxu0 %v608
    %1869 = vmatprep.subr.mxu0 0.0
    %1870 = vmatpush1.msra.mxu0 0.0
    %1871 = vmatprep.subr.mxu0 0.0
    %1872 = vmatpush1.msra.mxu0 0.0
    %1873 = vmatprep.subr.mxu0 0.0
    %1874 = vmatpush1.msra.mxu0 0.0
    %1875 = vmatprep.subr.mxu0 0.0
    %1876 = vmatpush1.msra.mxu0 0.0
    %1877 = vmatprep.subr.mxu0 0.0
    %1878 = vmatpush1.msra.mxu0 0.0
    %1879 = vmatprep.subr.mxu0 0.0
    %1880 = vmatpush1.msra.mxu0 0.0
    %1881 = vmatprep.subr.mxu0 0.0
    %1882 = vmatpush1.msra.mxu0 0.0
    %1883 = vmatprep.subr.mxu0 0.0
    %1884 = vmatpush1.msra.mxu0 0.0
    %1885 = vmatprep.subr.mxu0 0.0
    %1886 = vmatpush1.msra.mxu0 0.0
    %1887 = vmatprep.subr.mxu0 0.0
    %1888 = vmatpush1.msra.mxu0 0.0
    %1889 = vmatprep.subr.mxu0 0.0
    %1890 = vmatpush1.msra.mxu0 0.0
    %1891 = vmatprep.subr.mxu0 0.0
    %1892 = vmatpush1.msra.mxu0 0.0
    %1893 = vmatprep.subr.mxu0 0.0
    %1894 = vmatpush1.msra.mxu0 0.0
    %1895 = vmatprep.subr.mxu0 0.0
    %1896 = vmatpush1.msra.mxu0 0.0
    %1897 = vmatprep.subr.mxu0 0.0
    %1898 = vmatpush1.msra.mxu0 0.0
    %1899 = vmatprep.subr.mxu0 0.0
    %1900 = vmatpush1.msra.mxu0 0.0
    %1901 = vmatprep.mubr.f32.mxu0 0.0
    %1902 = vmatmul.mubr.f32.gmra.mrb[0].mxu0 %v1831
    %v1903 = vpop.f32.mrb[0].mxu0
    %v1904 = vadd.f32 0.0, %v1903
    %v1905 = vpop.f32.mrb[0].mxu0
    %v1906 = vadd.f32 0.0, %v1905
    %1907 = vdwg.mxu0
    %1908 = vmatprep.subr.mxu0 %v551
    %1909 = vmatpush1.msra.mxu0 %v550
    %1910 = vmatprep.subr.mxu0 %v555
    %1911 = vmatpush1.msra.mxu0 %v554
    %1912 = vmatprep.subr.mxu0 %v559
    %1913 = vmatpush1.msra.mxu0 %v558
    %1914 = vmatprep.subr.mxu0 %v563
    %1915 = vmatpush1.msra.mxu0 %v562
    %1916 = vmatprep.subr.mxu0 %v567
    %1917 = vmatpush1.msra.mxu0 %v566
    %1918 = vmatprep.subr.mxu0 %v571
    %1919 = vmatpush1.msra.mxu0 %v570
    %1920 = vmatprep.subr.mxu0 %v575
    %1921 = vmatpush1.msra.mxu0 %v574
    %1922 = vmatprep.subr.mxu0 %v579
    %1923 = vmatpush1.msra.mxu0 %v578
    %1924 = vmatprep.subr.mxu0 %v583
    %1925 = vmatpush1.msra.mxu0 %v582
    %1926 = vmatprep.subr.mxu0 %v587
    %1927 = vmatpush1.msra.mxu0 %v586
    %1928 = vmatprep.subr.mxu0 %v591
    %1929 = vmatpush1.msra.mxu0 %v590
    %1930 = vmatprep.subr.mxu0 %v595
    %1931 = vmatpush1.msra.mxu0 %v594
    %1932 = vmatprep.subr.mxu0 %v599
    %1933 = vmatpush1.msra.mxu0 %v598
    %1934 = vmatprep.subr.mxu0 %v603
    %1935 = vmatpush1.msra.mxu0 %v602
    %1936 = vmatprep.subr.mxu0 %v607
    %1937 = vmatpush1.msra.mxu0 %v606
    %1938 = vmatprep.subr.mxu0 %v611
    %1939 = vmatpush1.msra.mxu0 %v610
    %1940 = vmatprep.subr.mxu0 0.0
    %1941 = vmatpush1.msra.mxu0 0.0
    %1942 = vmatprep.subr.mxu0 0.0
    %1943 = vmatpush1.msra.mxu0 0.0
    %1944 = vmatprep.subr.mxu0 0.0
    %1945 = vmatpush1.msra.mxu0 0.0
    %1946 = vmatprep.subr.mxu0 0.0
    %1947 = vmatpush1.msra.mxu0 0.0
    %1948 = vmatprep.subr.mxu0 0.0
    %1949 = vmatpush1.msra.mxu0 0.0
    %1950 = vmatprep.subr.mxu0 0.0
    %1951 = vmatpush1.msra.mxu0 0.0
    %1952 = vmatprep.subr.mxu0 0.0
    %1953 = vmatpush1.msra.mxu0 0.0
    %1954 = vmatprep.subr.mxu0 0.0
    %1955 = vmatpush1.msra.mxu0 0.0
    %1956 = vmatprep.subr.mxu0 0.0
    %1957 = vmatpush1.msra.mxu0 0.0
    %1958 = vmatprep.subr.mxu0 0.0
    %1959 = vmatpush1.msra.mxu0 0.0
    %1960 = vmatprep.subr.mxu0 0.0
    %1961 = vmatpush1.msra.mxu0 0.0
    %1962 = vmatprep.subr.mxu0 0.0
    %1963 = vmatpush1.msra.mxu0 0.0
    %1964 = vmatprep.subr.mxu0 0.0
    %1965 = vmatpush1.msra.mxu0 0.0
    %1966 = vmatprep.subr.mxu0 0.0
    %1967 = vmatpush1.msra.mxu0 0.0
    %1968 = vmatprep.subr.mxu0 0.0
    %1969 = vmatpush1.msra.mxu0 0.0
    %1970 = vmatprep.subr.mxu0 0.0
    %1971 = vmatpush1.msra.mxu0 0.0
    %1972 = vmatprep.mubr.f32.mxu0 0.0
    %1973 = vmatmul.mubr.f32.gmra.mrb[0].mxu0 %v1831
    %v1974 = vpop.f32.mrb[0].mxu0
    %v1975 = vadd.f32 0.0, %v1974
    %v1976 = vpop.f32.mrb[0].mxu0
    %v1977 = vadd.f32 0.0, %v1976
    %1978 = vdwg.mxu0
    %v1979 = vadd.f32 %v1833, %v1904
    %v1980 = vadd.f32 %v1834, %v1906
    %v1981 = vadd.f32 %v1835, %v1975
    %v1982 = vadd.f32 %v1836, %v1977
    %v1983 = vxor.u32 %v1979, 2147483648
    %v1984 = vmul.f32 %v1983, 1.442695
    %v1985 = vpow.pop %v1984
    %v1986 = vadd.f32 %v1985, 1.0
    %v1987 = vrcp.pop %v1986
    %v1988 = vmul.f32 1.0, %v1987
    %v1989 = vxor.u32 %v1980, 2147483648
    %v1990 = vmul.f32 %v1989, 1.442695
    %v1991 = vpow.pop %v1990
    %v1992 = vadd.f32 %v1991, 1.0
    %v1993 = vrcp.pop %v1992
    %v1994 = vmul.f32 1.0, %v1993
    %v1995 = vtanh.pop %v1981
    %v1996 = vxor.u32 %v1982, 2147483648
    %v1997 = vmul.f32 %v1996, 1.442695
    %v1998 = vpow.pop %v1997
    %v1999 = vadd.f32 %v1998, 1.0
    %v2000 = vrcp.pop %v1999
    %v2001 = vmul.f32 1.0, %v2000
    %v2002 = vmul.f32 %v1994, %v1829
    %v2003 = vmul.f32 %v1988, %v1995
    %v2004 = vadd.f32 %v2002, %v2003
    %v2005 = vtanh.pop %v2004
    %v2006 = vmul.f32 %v2001, %v2005
    %2007 = vst [vmem:[#allocation2] sm:$0xff] %v2006
    %2008 = vst [vmem:[#allocation3] sm:$0xff] %v2004
    // Predicated region
    $region46: #{tpu_custom_call.1} parent=1 // pred_check
      %p2009 = pneg %p79
    $region47: #{tpu_custom_call.1} parent=1 // pred_check_branch
      %2011 = sbr.rel (%p2009) target = $region49
    $region48: #{tpu_custom_call.1} parent=1 // pred_region
      %v2012 = vld [vmem:[#allocation11] sm:$0xff]
      %v2013 = vld [vmem:[#allocation11 + $0x8] sm:$0xff]
      %v2014 = vld [vmem:[#allocation11 + $0x10] sm:$0xff]
      %v2015 = vld [vmem:[#allocation11 + $0x18] sm:$0xff]
      %v2016 = vld [vmem:[#allocation11 + $0x20] sm:$0xff]
      %v2017 = vld [vmem:[#allocation11 + $0x28] sm:$0xff]
      %v2018 = vld [vmem:[#allocation11 + $0x30] sm:$0xff]
      %v2019 = vld [vmem:[#allocation11 + $0x38] sm:$0xff]
      %v2020 = vld [vmem:[#allocation11 + $0x40] sm:$0xff]
      %v2021 = vld [vmem:[#allocation11 + $0x48] sm:$0xff]
      %v2022 = vld [vmem:[#allocation11 + $0x50] sm:$0xff]
      %v2023 = vld [vmem:[#allocation11 + $0x58] sm:$0xff]
      %v2024 = vld [vmem:[#allocation11 + $0x60] sm:$0xff]
      %v2025 = vld [vmem:[#allocation11 + $0x68] sm:$0xff]
      %v2026 = vld [vmem:[#allocation11 + $0x70] sm:$0xff]
      %v2027 = vld [vmem:[#allocation11 + $0x78] sm:$0xff]
      %v2028 = vld [vmem:[%s5] sm:$0x1]
      %v2030 = vlaneseq
      %v2031 = vshrl.u32 %v2030, 7
      %v2032 = vsub.s32 0, %v2031
      %v2033 = vrot.slane %v2028, %v2032
      %2035 = vmatprep.subr.mxu0 0.0
      %2036 = vmatpush1.msra.mxu0 %v2012
      %2037 = vmatprep.subr.mxu0 0.0
      %2038 = vmatpush1.msra.mxu0 %v2013
      %2039 = vmatprep.subr.mxu0 0.0
      %2040 = vmatpush1.msra.mxu0 %v2014
      %2041 = vmatprep.subr.mxu0 0.0
      %2042 = vmatpush1.msra.mxu0 %v2015
      %2043 = vmatprep.subr.mxu0 0.0
      %2044 = vmatpush1.msra.mxu0 %v2016
      %2045 = vmatprep.subr.mxu0 0.0
      %2046 = vmatpush1.msra.mxu0 %v2017
      %2047 = vmatprep.subr.mxu0 0.0
      %2048 = vmatpush1.msra.mxu0 %v2018
      %2049 = vmatprep.subr.mxu0 0.0
      %2050 = vmatpush1.msra.mxu0 %v2019
      %2051 = vmatprep.subr.mxu0 0.0
      %2052 = vmatpush1.msra.mxu0 %v2020
      %2053 = vmatprep.subr.mxu0 0.0
      %2054 = vmatpush1.msra.mxu0 %v2021
      %2055 = vmatprep.subr.mxu0 0.0
      %2056 = vmatpush1.msra.mxu0 %v2022
      %2057 = vmatprep.subr.mxu0 0.0
      %2058 = vmatpush1.msra.mxu0 %v2023
      %2059 = vmatprep.subr.mxu0 0.0
      %2060 = vmatpush1.msra.mxu0 %v2024
      %2061 = vmatprep.subr.mxu0 0.0
      %2062 = vmatpush1.msra.mxu0 %v2025
      %2063 = vmatprep.subr.mxu0 0.0
      %2064 = vmatpush1.msra.mxu0 %v2026
      %2065 = vmatprep.subr.mxu0 0.0
      %2066 = vmatpush1.msra.mxu0 %v2027
      %2067 = vmatprep.subr.mxu0 0.0
      %2068 = vmatpush1.msra.mxu0 0.0
      %2069 = vmatprep.subr.mxu0 0.0
      %2070 = vmatpush1.msra.mxu0 0.0
      %2071 = vmatprep.subr.mxu0 0.0
      %2072 = vmatpush1.msra.mxu0 0.0
      %2073 = vmatprep.subr.mxu0 0.0
      %2074 = vmatpush1.msra.mxu0 0.0
      %2075 = vmatprep.subr.mxu0 0.0
      %2076 = vmatpush1.msra.mxu0 0.0
      %2077 = vmatprep.subr.mxu0 0.0
      %2078 = vmatpush1.msra.mxu0 0.0
      %2079 = vmatprep.subr.mxu0 0.0
      %2080 = vmatpush1.msra.mxu0 0.0
      %2081 = vmatprep.subr.mxu0 0.0
      %2082 = vmatpush1.msra.mxu0 0.0
      %2083 = vmatprep.subr.mxu0 0.0
      %2084 = vmatpush1.msra.mxu0 0.0
      %2085 = vmatprep.subr.mxu0 0.0
      %2086 = vmatpush1.msra.mxu0 0.0
      %2087 = vmatprep.subr.mxu0 0.0
      %2088 = vmatpush1.msra.mxu0 0.0
      %2089 = vmatprep.subr.mxu0 0.0
      %2090 = vmatpush1.msra.mxu0 0.0
      %2091 = vmatprep.subr.mxu0 0.0
      %2092 = vmatpush1.msra.mxu0 0.0
      %2093 = vmatprep.subr.mxu0 0.0
      %2094 = vmatpush1.msra.mxu0 0.0
      %2095 = vmatprep.subr.mxu0 0.0
      %2096 = vmatpush1.msra.mxu0 0.0
      %2097 = vmatprep.subr.mxu0 0.0
      %2098 = vmatpush1.msra.mxu0 0.0
      %2099 = vmatprep.mubr.f32.mxu0 0.0
      %2100 = vmatmul.mubr.f32.gmra.mrb[0].mxu0 %v2006
      %v2101 = vpop.f32.mrb[0].mxu0
      %v2102 = vadd.f32 %v2033, %v2101
      %v2103 = vpop.f32.mrb[0].mxu0
      %2104 = vdwg.mxu0
      %2105 = vst [vmem:[#allocation13] sm:$0xff] %v2102
    $region49: #{tpu_custom_call.1} parent=1 // pred_fallthru
      _
    // Predicated region
    $region50: #{tpu_custom_call.1} parent=1 // pred_check
      _
    $region51: #{tpu_custom_call.1} parent=1 // pred_check_branch
      %2107 = sbr.rel (0) target = $region53
    $region52: #{tpu_custom_call.1} parent=1 // pred_region
      %s2109 = ssub.s32 128, 128
      %2110 = vsyncadd [#allocation7], %s2109
      %s2112 = sshll.u32 [#allocation13], 4
      %s2113 = int_to_ptr.vmem [resolvable:$true] %s2112
      %2115 = dma.vmem_to_hbm [thread:$0]  %s2113, 128, %s6, [#allocation7]
    $region53: #{tpu_custom_call.1} parent=1 // pred_fallthru
      _
    // Predicated region
    $region54: #{tpu_custom_call.1} parent=1 // pred_check
      _
    $region55: #{tpu_custom_call.1} parent=1 // pred_check_branch
      %2117 = sbr.rel (0) target = $region57
    $region56: #{tpu_custom_call.1} parent=1 // pred_region
      %2118 = dma.done [#allocation7], 128
    $region57: #{tpu_custom_call.1} parent=1 // pred_fallthru
      _
    %2119 = vsyncpa [#allocation6], 1
    %2120 = vsyncpa [#allocation9], 1
    %2121 = vsyncpa [#allocation12], 1
    %2122 = vsyncpa [#allocation7], 1

</llo_original>
